<compile_context>
chip_gen: v5e
topology: v5e:2x2
jax: 0.10.0
libtpu: 0.0.40
codegen_flags: <defaults>
</compile_context>

<pallas_src>
import functools

import jax
import jax.numpy as jnp
from jax.experimental import pallas as pl
from jax.experimental.pallas import tpu as pltpu


# ---------------------------------------------------------------------------
# Fused decoder kernel (one invocation per batch element).
# ---------------------------------------------------------------------------

def _vq_decoder_kernel(*refs, has_conv_in, n_resblk, n_up, neg_slope, act_dtype):
    x_ref, o_ref = refs[0], refs[-1]
    w_iter = iter(refs[1:-1])

    def _zero_row(a2d):
        return jnp.zeros((1, a2d.shape[1]), a2d.dtype)

    def _shift_down(a2d):                      # row t -> a[t-1]; zero at t=0
        return jnp.concatenate([_zero_row(a2d), a2d[:-1, :]], axis=0)

    def _shift_up(a2d):                        # row t -> a[t+1]; zero at t=T-1
        return jnp.concatenate([a2d[1:, :], _zero_row(a2d)], axis=0)

    def _seq_shifts(a):
        """Whole-sequence shifts by -1 / +1 on the (P, T0, C) phase array."""
        p = a.shape[0]
        prev_tail = _shift_down(a[p - 1])[None]       # phase 0's "previous"
        next_head = _shift_up(a[0])[None]             # phase P-1's "next"
        if p == 1:
            return prev_tail, next_head
        xm1 = jnp.concatenate([prev_tail, a[:p - 1]], axis=0)
        xp1 = jnp.concatenate([a[1:], next_head], axis=0)
        return xm1, xp1

    def _dot_bias(lhs2d, w_ref, b_ref):
        y = jnp.dot(lhs2d, w_ref[...], preferred_element_type=jnp.float32)
        return y + b_ref[...]                          # (1, Cout) broadcast

    def conv3(a, w_ref, b_ref, relu=False):
        """Conv1d(k=3, s=1, p=1): ONE batched MXU matmul over all phases."""
        p, t0, cin = a.shape
        cout = w_ref.shape[-1]
        xm1, xp1 = _seq_shifts(a)
        lhs = jnp.concatenate([xm1, a, xp1], axis=-1).reshape(p * t0, 3 * cin)
        y = _dot_bias(lhs, w_ref, b_ref)
        if relu:
            y = jnp.maximum(y, 0.0)
        return y.reshape(p, t0, cout)                  # f32

    def up2_conv3_lrelu(a, we_ref, wo_ref, b_ref):
        """Fused nearest-2x upsample + Conv1d(k=3,p=1) + LeakyReLU.

        even out phase 2r = (seq[.-1] | seq[.]) @ (w0 | w1+w2) + b
        odd  out phase 2r+1 = (seq[.] | seq[.+1]) @ (w0+w1 | w2) + b
        computed on the un-upsampled phases; phase count doubles, the 2x
        tensor is never built.  One batched matmul per parity.
        """
        p, t0, cin = a.shape
        cout = we_ref.shape[-1]
        xm1, xp1 = _seq_shifts(a)
        lhs_e = jnp.concatenate([xm1, a], axis=-1).reshape(p * t0, 2 * cin)
        lhs_o = jnp.concatenate([a, xp1], axis=-1).reshape(p * t0, 2 * cin)
        ye = _dot_bias(lhs_e, we_ref, b_ref)
        yo = _dot_bias(lhs_o, wo_ref, b_ref)
        ye = jnp.where(ye > 0.0, ye, neg_slope * ye).astype(act_dtype)
        yo = jnp.where(yo > 0.0, yo, neg_slope * yo).astype(act_dtype)
        ye = ye.reshape(p, t0, cout)
        yo = yo.reshape(p, t0, cout)
        # Interleave parities: out[2r] = ye[r], out[2r+1] = yo[r].
        return jnp.stack([ye, yo], axis=1).reshape(2 * p, t0, cout)

    # Phase-decomposed activation, P starts at 1: shape (P, T0, C).
    a = x_ref[...].astype(act_dtype)

    if has_conv_in:
        w, b = next(w_iter), next(w_iter)
        a = conv3(a, w, b).astype(act_dtype)

    for _ in range(n_resblk):
        w1, b1, w2, b2 = (next(w_iter) for _ in range(4))
        mid = conv3(a, w1, b1, relu=True).astype(act_dtype)
        out = conv3(mid, w2, b2)                            # f32
        a = (out + a.astype(jnp.float32)).astype(act_dtype)  # residual add in f32

    for _ in range(n_up):
        we, wo, b = (next(w_iter) for _ in range(3))
        a = up2_conv3_lrelu(a, we, wo, b)

    w, b = next(w_iter), next(w_iter)
    y = conv3(a, w, b).astype(o_ref.dtype)                  # (P_final, T0, C_out)

    # Direct lane-column stores (no (T0, P*C) concat temporary).
    p_final, _, c_out = y.shape
    for q in range(p_final):
        o_ref[0, :, q * c_out:(q + 1) * c_out] = y[q]


# ---------------------------------------------------------------------------
# Weight packing + wrapper.
# ---------------------------------------------------------------------------

def _pack_conv(w, b, mxu_dtype):
    """(3, Cin, Cout), (Cout,) -> (3*Cin, Cout) mxu_dtype weight, (1, Cout) f32 bias."""
    k, cin, cout = w.shape
    return (w.reshape(k * cin, cout).astype(mxu_dtype),
            b.reshape(1, cout).astype(jnp.float32))


def _pack_up_conv(w, b, mxu_dtype):
    """Even/odd-phase combined weights (combined in f32, then cast)."""
    cout = w.shape[-1]
    w_even = jnp.concatenate([w[0], w[1] + w[2]], axis=0).astype(mxu_dtype)
    w_odd = jnp.concatenate([w[0] + w[1], w[2]], axis=0).astype(mxu_dtype)
    return w_even, w_odd, b.reshape(1, cout).astype(jnp.float32)


def _vmem_limit_bytes(T, layer_dims, flat, x, out_cols, act_dtype):
    """Footprint-derived, generation-aware vmem limit for the fused call."""
    act_is = jnp.dtype(act_dtype).itemsize
    io_is = jnp.dtype(x.dtype).itemsize
    w_bytes = sum(int(a.size) * a.dtype.itemsize for a in flat)
    peak_act = 0
    for _, p_in, c_i, c_o, p_out in layer_dims:
        live = (p_in * T * c_i) * act_is          # resident input phases
        live += 3 * (p_in * T * c_i) * act_is     # shifted-operand lane concat
        live += (p_out * T * c_o) * 4             # f32 matmul result(s)
        live += (p_out * T * c_o) * act_is        # down-cast layer output
        peak_act = max(peak_act, live)
    in_block = T * x.shape[-1] * io_is
    out_block = T * out_cols * io_is
    need = 2 * w_bytes + 2 * (in_block + out_block) + 2 * peak_act
    try:
        cap = int(getattr(pltpu.get_tpu_info(), "vmem_capacity_bytes", 128 << 20))
    except Exception:
        cap = 128 << 20
    limit = min(max(need, 32 << 20), int(0.75 * cap))
    return max(int(limit), 16 << 20)


def vq_decoder_forward(x, params, input_size, channels, n_resblk, n_up,
                       mxu_dtype=jnp.bfloat16):
    """x: (B, T, input_size) -> (B, T * 2**n_up, channels[-1])."""
    assert len(channels) == n_up + 1
    B, T, cin = x.shape
    assert cin == input_size
    # Batched-phase reshapes / sublane-aligned phase stacking need T % 8 == 0
    # (pad + crop in the caller on the production path).
    assert T % 8 == 0, "T must be a multiple of 8"
    p_final = 2 ** n_up
    c_out = channels[-1]
    out_cols = p_final * c_out
    has_conv_in = input_size != channels[0]

    # Pack weights (pre-cast to mxu_dtype, biases f32) + per-layer dims.
    flat, layer_dims = [], []
    P = 1
    if has_conv_in:
        flat += list(_pack_conv(*params["conv_in"], mxu_dtype))
        layer_dims.append(("conv", P, input_size, channels[0], P))
    for i in range(n_resblk):
        w1, b1, w2, b2 = params[f"res{i}"]
        flat += list(_pack_conv(w1, b1, mxu_dtype)) + list(_pack_conv(w2, b2, mxu_dtype))
        layer_dims.append(("conv", P, channels[0], channels[0], P))
        layer_dims.append(("conv", P, channels[0], channels[0], P))
    for i in range(n_up):
        flat += list(_pack_up_conv(*params[f"up{i}"], mxu_dtype))
        layer_dims.append(("up", P, channels[i], channels[i + 1], 2 * P))
        P *= 2
    flat += list(_pack_conv(*params["conv_out"], mxu_dtype))
    layer_dims.append(("conv", P, channels[-1], channels[-1], P))

    # Cost estimate: lets XLA overlap surrounding HLO with this call.
    macs = 0
    for kind, p_in, c_i, c_o, _ in layer_dims:
        taps = 4 if kind == "up" else 3     # up: two (2*Cin, Cout) dots / phase
        macs += taps * p_in * T * c_i * c_o
    flops = 2 * B * macs
    bytes_accessed = (int(x.size) * x.dtype.itemsize
                      + sum(int(a.size) * a.dtype.itemsize for a in flat)
                      + B * T * out_cols * jnp.dtype(x.dtype).itemsize)

    vmem_limit = _vmem_limit_bytes(T, layer_dims, flat, x, out_cols, mxu_dtype)

    w_imap = lambda i: (0, 0)   # weights: same whole-array block every grid step
    in_specs = [pl.BlockSpec((1, T, cin), lambda i: (i, 0, 0))]
    in_specs += [pl.BlockSpec(a.shape, w_imap) for a in flat]

    kernel = functools.partial(
        _vq_decoder_kernel, has_conv_in=has_conv_in, n_resblk=n_resblk,
        n_up=n_up, neg_slope=0.2, act_dtype=mxu_dtype)

    out = pl.pallas_call(
        kernel,
        out_shape=jax.ShapeDtypeStruct((B, T, out_cols), x.dtype),
        grid=(B,),
        in_specs=in_specs,
        out_specs=pl.BlockSpec((1, T, out_cols), lambda i: (i, 0, 0)),
        compiler_params=pltpu.CompilerParams(
            dimension_semantics=("parallel",),
            vmem_limit_bytes=vmem_limit),
        cost_estimate=pl.CostEstimate(
            flops=int(flops), transcendentals=0,
            bytes_accessed=int(bytes_accessed)),
    )(x, *flat)

    # Row-major identity reshape back to the module's external layout:
    # (B, T0, P*C) -> (B, T0*P, C) with sequence index P*t + q.
    return out.reshape(B, T * p_final, c_out)


# ---------------------------------------------------------------------------
# Init (matches nn.init.xavier_normal_ on Conv1d weight, bias = 0).
# ---------------------------------------------------------------------------

def xavier_normal_conv(key, cin, cout, k=3):
    fan_in, fan_out = cin * k, cout * k
    std = (2.0 / (fan_in + fan_out)) ** 0.5
    w = std * jax.random.normal(key, (k, cin, cout), dtype=jnp.float32)
    b = jnp.zeros((cout,), jnp.float32)
    return w, b


def init_params(key, input_size, channels, n_resblk, n_up):
    assert len(channels) == n_up + 1
    has_conv_in = input_size != channels[0]
    n_convs = (1 if has_conv_in else 0) + 2 * n_resblk + n_up + 1
    keys = iter(jax.random.split(key, n_convs))
    params = {}
    if has_conv_in:
        params["conv_in"] = xavier_normal_conv(next(keys), input_size, channels[0])
    for i in range(n_resblk):
        w1, b1 = xavier_normal_conv(next(keys), channels[0], channels[0])
        w2, b2 = xavier_normal_conv(next(keys), channels[0], channels[0])
        params[f"res{i}"] = (w1, b1, w2, b2)
    for i in range(n_up):
        params[f"up{i}"] = xavier_normal_conv(next(keys), channels[i], channels[i + 1])
    params["conv_out"] = xavier_normal_conv(next(keys), channels[-1], channels[-1])
    return params


# ---------------------------------------------------------------------------
# Pure-JAX (XLA) reference for correctness checking.
# ---------------------------------------------------------------------------

def _conv1d_ref(x, w, b):
    xp = jnp.pad(x, ((0, 0), (1, 1), (0, 0)))
    return (jnp.einsum("btc,cd->btd", xp[:, :-2, :], w[0])
            + jnp.einsum("btc,cd->btd", xp[:, 1:-1, :], w[1])
            + jnp.einsum("btc,cd->btd", xp[:, 2:, :], w[2]) + b)


def vq_decoder_reference(x, params, input_size, channels, n_resblk, n_up):
    h = x
    if input_size != channels[0]:
        h = _conv1d_ref(h, *params["conv_in"])
    for i in range(n_resblk):
        w1, b1, w2, b2 = params[f"res{i}"]
        h = _conv1d_ref(jax.nn.relu(_conv1d_ref(h, w1, b1)), w2, b2) + h
    for i in range(n_up):
        h = jnp.repeat(h, 2, axis=1)
        w, b = params[f"up{i}"]
        h = jax.nn.leaky_relu(_conv1d_ref(h, w, b), negative_slope=0.2)
    return _conv1d_ref(h, *params["conv_out"])


if __name__ == "__main__":
    # Small config; input_size != channels[0] so the input conv is exercised.
    input_size = 6
    channels = [8, 8, 4]   # len == n_up + 1
    n_resblk = 2
    n_up = 2
    B, T = 2, 8

    key = jax.random.PRNGKey(0)
    kx, kp = jax.random.split(key)
    x = jax.random.normal(kx, (B, T, input_size), dtype=jnp.float32)
    params = init_params(kp, input_size, channels, n_resblk, n_up)

    ref = vq_decoder_reference(x, params, input_size, channels, n_resblk, n_up)

    # f32-fed MXU / f32 activations: checked tightly against the XLA reference.
    out_f32 = jax.block_until_ready(
        vq_decoder_forward(x, params, input_size, channels, n_resblk, n_up,
                           mxu_dtype=jnp.float32))
    assert out_f32.shape == (B, T * 2 ** n_up, channels[-1]), out_f32.shape
    assert jnp.all(jnp.isfinite(out_f32))
    assert jnp.allclose(out_f32, ref, atol=5e-2, rtol=5e-2), (
        float(jnp.max(jnp.abs(out_f32 - ref))))

    # bf16 weights + bf16 inter-layer activations (perf path); f32 accumulation.
    out_bf16 = jax.block_until_ready(
        vq_decoder_forward(x, params, input_size, channels, n_resblk, n_up,
                           mxu_dtype=jnp.bfloat16))
    assert out_bf16.shape == (B, T * 2 ** n_up, channels[-1]), out_bf16.shape
    assert jnp.all(jnp.isfinite(out_bf16))
    assert jnp.allclose(out_bf16, ref, atol=1.5e-1, rtol=1.5e-1), (
        float(jnp.max(jnp.abs(out_bf16 - ref))))

    print("KERNEL_OK")
</pallas_src>

<mosaic_0001>
module attributes {stable_mosaic.version = 11 : i64} {
  func.func @_vq_decoder_kernel(%arg0: i32, %arg1: memref<1x8x6xf32, #tpu.memory_space<vmem>>, %arg2: memref<18x8xf32, #tpu.memory_space<vmem>>, %arg3: memref<1x8xf32, #tpu.memory_space<vmem>>, %arg4: memref<24x8xf32, #tpu.memory_space<vmem>>, %arg5: memref<1x8xf32, #tpu.memory_space<vmem>>, %arg6: memref<24x8xf32, #tpu.memory_space<vmem>>, %arg7: memref<1x8xf32, #tpu.memory_space<vmem>>, %arg8: memref<24x8xf32, #tpu.memory_space<vmem>>, %arg9: memref<1x8xf32, #tpu.memory_space<vmem>>, %arg10: memref<24x8xf32, #tpu.memory_space<vmem>>, %arg11: memref<1x8xf32, #tpu.memory_space<vmem>>, %arg12: memref<16x8xf32, #tpu.memory_space<vmem>>, %arg13: memref<16x8xf32, #tpu.memory_space<vmem>>, %arg14: memref<1x8xf32, #tpu.memory_space<vmem>>, %arg15: memref<16x4xf32, #tpu.memory_space<vmem>>, %arg16: memref<16x4xf32, #tpu.memory_space<vmem>>, %arg17: memref<1x4xf32, #tpu.memory_space<vmem>>, %arg18: memref<12x4xf32, #tpu.memory_space<vmem>>, %arg19: memref<1x4xf32, #tpu.memory_space<vmem>>, %arg20: memref<1x8x16xf32, #tpu.memory_space<vmem>>) attributes {dimension_semantics = [#tpu.dimension_semantics<parallel>], iteration_bounds = array<i64: 2>, scalar_prefetch = 0 : i64, scratch_operands = 0 : i64, tpu.core_type = #tpu.core_type<tc>, window_params = [{transform_indices = @transform_0, window_bounds = array<i64: 1, 8, 6>}, {pipeline_mode = #tpu.pipeline_mode<synchronous>, transform_indices = @transform_1, window_bounds = array<i64: 18, 8>}, {pipeline_mode = #tpu.pipeline_mode<synchronous>, transform_indices = @transform_2, window_bounds = array<i64: 1, 8>}, {pipeline_mode = #tpu.pipeline_mode<synchronous>, transform_indices = @transform_3, window_bounds = array<i64: 24, 8>}, {pipeline_mode = #tpu.pipeline_mode<synchronous>, transform_indices = @transform_4, window_bounds = array<i64: 1, 8>}, {pipeline_mode = #tpu.pipeline_mode<synchronous>, transform_indices = @transform_5, window_bounds = array<i64: 24, 8>}, {pipeline_mode = #tpu.pipeline_mode<synchronous>, transform_indices = @transform_6, window_bounds = array<i64: 1, 8>}, {pipeline_mode = #tpu.pipeline_mode<synchronous>, transform_indices = @transform_7, window_bounds = array<i64: 24, 8>}, {pipeline_mode = #tpu.pipeline_mode<synchronous>, transform_indices = @transform_8, window_bounds = array<i64: 1, 8>}, {pipeline_mode = #tpu.pipeline_mode<synchronous>, transform_indices = @transform_9, window_bounds = array<i64: 24, 8>}, {pipeline_mode = #tpu.pipeline_mode<synchronous>, transform_indices = @transform_10, window_bounds = array<i64: 1, 8>}, {pipeline_mode = #tpu.pipeline_mode<synchronous>, transform_indices = @transform_11, window_bounds = array<i64: 16, 8>}, {pipeline_mode = #tpu.pipeline_mode<synchronous>, transform_indices = @transform_12, window_bounds = array<i64: 16, 8>}, {pipeline_mode = #tpu.pipeline_mode<synchronous>, transform_indices = @transform_13, window_bounds = array<i64: 1, 8>}, {pipeline_mode = #tpu.pipeline_mode<synchronous>, transform_indices = @transform_14, window_bounds = array<i64: 16, 4>}, {pipeline_mode = #tpu.pipeline_mode<synchronous>, transform_indices = @transform_15, window_bounds = array<i64: 16, 4>}, {pipeline_mode = #tpu.pipeline_mode<synchronous>, transform_indices = @transform_16, window_bounds = array<i64: 1, 4>}, {pipeline_mode = #tpu.pipeline_mode<synchronous>, transform_indices = @transform_17, window_bounds = array<i64: 12, 4>}, {pipeline_mode = #tpu.pipeline_mode<synchronous>, transform_indices = @transform_18, window_bounds = array<i64: 1, 4>}, {transform_indices = @transform_19, window_bounds = array<i64: 1, 8, 16>}]} {
    %c0 = arith.constant 0 : index
    %c0_0 = arith.constant 0 : index
    %c0_1 = arith.constant 0 : index
    %0 = vector.load %arg1[%c0, %c0_0, %c0_1] : memref<1x8x6xf32, #tpu.memory_space<vmem>>, vector<1x8x6xf32>
    %1 = vector.shape_cast %0 : vector<1x8x6xf32> to vector<8x6xf32>
    %cst = arith.constant 0.000000e+00 : f32
    %2 = vector.broadcast %cst : f32 to vector<1x6xf32>
    %3 = vector.extract_strided_slice %1 {offsets = [0, 0], sizes = [7, 6], strides = [1, 1]} : vector<8x6xf32> to vector<7x6xf32>
    %4 = tpu.concatenate %2, %3 in 0 : vector<1x6xf32>, vector<7x6xf32> -> vector<8x6xf32>
    %5 = vector.shape_cast %4 : vector<8x6xf32> to vector<1x8x6xf32>
    %6 = vector.shape_cast %0 : vector<1x8x6xf32> to vector<8x6xf32>
    %7 = vector.extract_strided_slice %6 {offsets = [1, 0], sizes = [7, 6], strides = [1, 1]} : vector<8x6xf32> to vector<7x6xf32>
    %cst_2 = arith.constant 0.000000e+00 : f32
    %8 = vector.broadcast %cst_2 : f32 to vector<1x6xf32>
    %9 = tpu.concatenate %7, %8 in 0 : vector<7x6xf32>, vector<1x6xf32> -> vector<8x6xf32>
    %10 = vector.shape_cast %9 : vector<8x6xf32> to vector<1x8x6xf32>
    %11 = tpu.concatenate %5, %0, %10 in 2 : vector<1x8x6xf32>, vector<1x8x6xf32>, vector<1x8x6xf32> -> vector<1x8x18xf32>
    %12 = vector.shape_cast %11 : vector<1x8x18xf32> to vector<8x18xf32>
    %c0_3 = arith.constant 0 : index
    %c0_4 = arith.constant 0 : index
    %13 = vector.load %arg2[%c0_3, %c0_4] : memref<18x8xf32, #tpu.memory_space<vmem>>, vector<18x8xf32>
    %cst_5 = arith.constant dense<0.000000e+00> : vector<8x8xf32>
    %14 = tpu.matmul %12, %13, %cst_5 {dimension_numbers = #tpu.dot_dimension_numbers<[1], [0], [0], [1], [0, 0, 1, 1], [], []>} : vector<8x18xf32>, vector<18x8xf32>, vector<8x8xf32> -> vector<8x8xf32>
    %c0_6 = arith.constant 0 : index
    %c0_7 = arith.constant 0 : index
    %15 = vector.load %arg3[%c0_6, %c0_7] : memref<1x8xf32, #tpu.memory_space<vmem>>, vector<1x8xf32>
    %16 = vector.broadcast %15 : vector<1x8xf32> to vector<8x8xf32>
    %17 = arith.addf %14, %16 : vector<8x8xf32>
    %18 = vector.shape_cast %17 : vector<8x8xf32> to vector<1x8x8xf32>
    %19 = vector.shape_cast %18 : vector<1x8x8xf32> to vector<8x8xf32>
    %cst_8 = arith.constant 0.000000e+00 : f32
    %20 = vector.broadcast %cst_8 : f32 to vector<1x8xf32>
    %21 = vector.extract_strided_slice %19 {offsets = [0, 0], sizes = [7, 8], strides = [1, 1]} : vector<8x8xf32> to vector<7x8xf32>
    %22 = tpu.concatenate %20, %21 in 0 : vector<1x8xf32>, vector<7x8xf32> -> vector<8x8xf32>
    %23 = vector.shape_cast %22 : vector<8x8xf32> to vector<1x8x8xf32>
    %24 = vector.shape_cast %18 : vector<1x8x8xf32> to vector<8x8xf32>
    %25 = vector.extract_strided_slice %24 {offsets = [1, 0], sizes = [7, 8], strides = [1, 1]} : vector<8x8xf32> to vector<7x8xf32>
    %cst_9 = arith.constant 0.000000e+00 : f32
    %26 = vector.broadcast %cst_9 : f32 to vector<1x8xf32>
    %27 = tpu.concatenate %25, %26 in 0 : vector<7x8xf32>, vector<1x8xf32> -> vector<8x8xf32>
    %28 = vector.shape_cast %27 : vector<8x8xf32> to vector<1x8x8xf32>
    %29 = tpu.concatenate %23, %18, %28 in 2 : vector<1x8x8xf32>, vector<1x8x8xf32>, vector<1x8x8xf32> -> vector<1x8x24xf32>
    %30 = vector.shape_cast %29 : vector<1x8x24xf32> to vector<8x24xf32>
    %c0_10 = arith.constant 0 : index
    %c0_11 = arith.constant 0 : index
    %31 = vector.load %arg4[%c0_10, %c0_11] : memref<24x8xf32, #tpu.memory_space<vmem>>, vector<24x8xf32>
    %cst_12 = arith.constant dense<0.000000e+00> : vector<8x8xf32>
    %32 = tpu.matmul %30, %31, %cst_12 {dimension_numbers = #tpu.dot_dimension_numbers<[1], [0], [0], [1], [0, 0, 1, 1], [], []>} : vector<8x24xf32>, vector<24x8xf32>, vector<8x8xf32> -> vector<8x8xf32>
    %c0_13 = arith.constant 0 : index
    %c0_14 = arith.constant 0 : index
    %33 = vector.load %arg5[%c0_13, %c0_14] : memref<1x8xf32, #tpu.memory_space<vmem>>, vector<1x8xf32>
    %34 = vector.broadcast %33 : vector<1x8xf32> to vector<8x8xf32>
    %35 = arith.addf %32, %34 : vector<8x8xf32>
    %cst_15 = arith.constant 0.000000e+00 : f32
    %36 = vector.broadcast %cst_15 : f32 to vector<8x8xf32>
    %37 = arith.maximumf %35, %36 : vector<8x8xf32>
    %38 = vector.shape_cast %37 : vector<8x8xf32> to vector<1x8x8xf32>
    %39 = vector.shape_cast %38 : vector<1x8x8xf32> to vector<8x8xf32>
    %cst_16 = arith.constant 0.000000e+00 : f32
    %40 = vector.broadcast %cst_16 : f32 to vector<1x8xf32>
    %41 = vector.extract_strided_slice %39 {offsets = [0, 0], sizes = [7, 8], strides = [1, 1]} : vector<8x8xf32> to vector<7x8xf32>
    %42 = tpu.concatenate %40, %41 in 0 : vector<1x8xf32>, vector<7x8xf32> -> vector<8x8xf32>
    %43 = vector.shape_cast %42 : vector<8x8xf32> to vector<1x8x8xf32>
    %44 = vector.shape_cast %38 : vector<1x8x8xf32> to vector<8x8xf32>
    %45 = vector.extract_strided_slice %44 {offsets = [1, 0], sizes = [7, 8], strides = [1, 1]} : vector<8x8xf32> to vector<7x8xf32>
    %cst_17 = arith.constant 0.000000e+00 : f32
    %46 = vector.broadcast %cst_17 : f32 to vector<1x8xf32>
    %47 = tpu.concatenate %45, %46 in 0 : vector<7x8xf32>, vector<1x8xf32> -> vector<8x8xf32>
    %48 = vector.shape_cast %47 : vector<8x8xf32> to vector<1x8x8xf32>
    %49 = tpu.concatenate %43, %38, %48 in 2 : vector<1x8x8xf32>, vector<1x8x8xf32>, vector<1x8x8xf32> -> vector<1x8x24xf32>
    %50 = vector.shape_cast %49 : vector<1x8x24xf32> to vector<8x24xf32>
    %c0_18 = arith.constant 0 : index
    %c0_19 = arith.constant 0 : index
    %51 = vector.load %arg6[%c0_18, %c0_19] : memref<24x8xf32, #tpu.memory_space<vmem>>, vector<24x8xf32>
    %cst_20 = arith.constant dense<0.000000e+00> : vector<8x8xf32>
    %52 = tpu.matmul %50, %51, %cst_20 {dimension_numbers = #tpu.dot_dimension_numbers<[1], [0], [0], [1], [0, 0, 1, 1], [], []>} : vector<8x24xf32>, vector<24x8xf32>, vector<8x8xf32> -> vector<8x8xf32>
    %c0_21 = arith.constant 0 : index
    %c0_22 = arith.constant 0 : index
    %53 = vector.load %arg7[%c0_21, %c0_22] : memref<1x8xf32, #tpu.memory_space<vmem>>, vector<1x8xf32>
    %54 = vector.broadcast %53 : vector<1x8xf32> to vector<8x8xf32>
    %55 = arith.addf %52, %54 : vector<8x8xf32>
    %56 = vector.shape_cast %55 : vector<8x8xf32> to vector<1x8x8xf32>
    %57 = arith.addf %56, %18 : vector<1x8x8xf32>
    %58 = vector.shape_cast %57 : vector<1x8x8xf32> to vector<8x8xf32>
    %cst_23 = arith.constant 0.000000e+00 : f32
    %59 = vector.broadcast %cst_23 : f32 to vector<1x8xf32>
    %60 = vector.extract_strided_slice %58 {offsets = [0, 0], sizes = [7, 8], strides = [1, 1]} : vector<8x8xf32> to vector<7x8xf32>
    %61 = tpu.concatenate %59, %60 in 0 : vector<1x8xf32>, vector<7x8xf32> -> vector<8x8xf32>
    %62 = vector.shape_cast %61 : vector<8x8xf32> to vector<1x8x8xf32>
    %63 = vector.shape_cast %57 : vector<1x8x8xf32> to vector<8x8xf32>
    %64 = vector.extract_strided_slice %63 {offsets = [1, 0], sizes = [7, 8], strides = [1, 1]} : vector<8x8xf32> to vector<7x8xf32>
    %cst_24 = arith.constant 0.000000e+00 : f32
    %65 = vector.broadcast %cst_24 : f32 to vector<1x8xf32>
    %66 = tpu.concatenate %64, %65 in 0 : vector<7x8xf32>, vector<1x8xf32> -> vector<8x8xf32>
    %67 = vector.shape_cast %66 : vector<8x8xf32> to vector<1x8x8xf32>
    %68 = tpu.concatenate %62, %57, %67 in 2 : vector<1x8x8xf32>, vector<1x8x8xf32>, vector<1x8x8xf32> -> vector<1x8x24xf32>
    %69 = vector.shape_cast %68 : vector<1x8x24xf32> to vector<8x24xf32>
    %c0_25 = arith.constant 0 : index
    %c0_26 = arith.constant 0 : index
    %70 = vector.load %arg8[%c0_25, %c0_26] : memref<24x8xf32, #tpu.memory_space<vmem>>, vector<24x8xf32>
    %cst_27 = arith.constant dense<0.000000e+00> : vector<8x8xf32>
    %71 = tpu.matmul %69, %70, %cst_27 {dimension_numbers = #tpu.dot_dimension_numbers<[1], [0], [0], [1], [0, 0, 1, 1], [], []>} : vector<8x24xf32>, vector<24x8xf32>, vector<8x8xf32> -> vector<8x8xf32>
    %c0_28 = arith.constant 0 : index
    %c0_29 = arith.constant 0 : index
    %72 = vector.load %arg9[%c0_28, %c0_29] : memref<1x8xf32, #tpu.memory_space<vmem>>, vector<1x8xf32>
    %73 = vector.broadcast %72 : vector<1x8xf32> to vector<8x8xf32>
    %74 = arith.addf %71, %73 : vector<8x8xf32>
    %cst_30 = arith.constant 0.000000e+00 : f32
    %75 = vector.broadcast %cst_30 : f32 to vector<8x8xf32>
    %76 = arith.maximumf %74, %75 : vector<8x8xf32>
    %77 = vector.shape_cast %76 : vector<8x8xf32> to vector<1x8x8xf32>
    %78 = vector.shape_cast %77 : vector<1x8x8xf32> to vector<8x8xf32>
    %cst_31 = arith.constant 0.000000e+00 : f32
    %79 = vector.broadcast %cst_31 : f32 to vector<1x8xf32>
    %80 = vector.extract_strided_slice %78 {offsets = [0, 0], sizes = [7, 8], strides = [1, 1]} : vector<8x8xf32> to vector<7x8xf32>
    %81 = tpu.concatenate %79, %80 in 0 : vector<1x8xf32>, vector<7x8xf32> -> vector<8x8xf32>
    %82 = vector.shape_cast %81 : vector<8x8xf32> to vector<1x8x8xf32>
    %83 = vector.shape_cast %77 : vector<1x8x8xf32> to vector<8x8xf32>
    %84 = vector.extract_strided_slice %83 {offsets = [1, 0], sizes = [7, 8], strides = [1, 1]} : vector<8x8xf32> to vector<7x8xf32>
    %cst_32 = arith.constant 0.000000e+00 : f32
    %85 = vector.broadcast %cst_32 : f32 to vector<1x8xf32>
    %86 = tpu.concatenate %84, %85 in 0 : vector<7x8xf32>, vector<1x8xf32> -> vector<8x8xf32>
    %87 = vector.shape_cast %86 : vector<8x8xf32> to vector<1x8x8xf32>
    %88 = tpu.concatenate %82, %77, %87 in 2 : vector<1x8x8xf32>, vector<1x8x8xf32>, vector<1x8x8xf32> -> vector<1x8x24xf32>
    %89 = vector.shape_cast %88 : vector<1x8x24xf32> to vector<8x24xf32>
    %c0_33 = arith.constant 0 : index
    %c0_34 = arith.constant 0 : index
    %90 = vector.load %arg10[%c0_33, %c0_34] : memref<24x8xf32, #tpu.memory_space<vmem>>, vector<24x8xf32>
    %cst_35 = arith.constant dense<0.000000e+00> : vector<8x8xf32>
    %91 = tpu.matmul %89, %90, %cst_35 {dimension_numbers = #tpu.dot_dimension_numbers<[1], [0], [0], [1], [0, 0, 1, 1], [], []>} : vector<8x24xf32>, vector<24x8xf32>, vector<8x8xf32> -> vector<8x8xf32>
    %c0_36 = arith.constant 0 : index
    %c0_37 = arith.constant 0 : index
    %92 = vector.load %arg11[%c0_36, %c0_37] : memref<1x8xf32, #tpu.memory_space<vmem>>, vector<1x8xf32>
    %93 = vector.broadcast %92 : vector<1x8xf32> to vector<8x8xf32>
    %94 = arith.addf %91, %93 : vector<8x8xf32>
    %95 = vector.shape_cast %94 : vector<8x8xf32> to vector<1x8x8xf32>
    %96 = arith.addf %95, %57 : vector<1x8x8xf32>
    %97 = vector.shape_cast %96 : vector<1x8x8xf32> to vector<8x8xf32>
    %cst_38 = arith.constant 0.000000e+00 : f32
    %98 = vector.broadcast %cst_38 : f32 to vector<1x8xf32>
    %99 = vector.extract_strided_slice %97 {offsets = [0, 0], sizes = [7, 8], strides = [1, 1]} : vector<8x8xf32> to vector<7x8xf32>
    %100 = tpu.concatenate %98, %99 in 0 : vector<1x8xf32>, vector<7x8xf32> -> vector<8x8xf32>
    %101 = vector.shape_cast %100 : vector<8x8xf32> to vector<1x8x8xf32>
    %102 = vector.shape_cast %96 : vector<1x8x8xf32> to vector<8x8xf32>
    %103 = vector.extract_strided_slice %102 {offsets = [1, 0], sizes = [7, 8], strides = [1, 1]} : vector<8x8xf32> to vector<7x8xf32>
    %cst_39 = arith.constant 0.000000e+00 : f32
    %104 = vector.broadcast %cst_39 : f32 to vector<1x8xf32>
    %105 = tpu.concatenate %103, %104 in 0 : vector<7x8xf32>, vector<1x8xf32> -> vector<8x8xf32>
    %106 = vector.shape_cast %105 : vector<8x8xf32> to vector<1x8x8xf32>
    %107 = tpu.concatenate %101, %96 in 2 : vector<1x8x8xf32>, vector<1x8x8xf32> -> vector<1x8x16xf32>
    %108 = vector.shape_cast %107 : vector<1x8x16xf32> to vector<8x16xf32>
    %109 = tpu.concatenate %96, %106 in 2 : vector<1x8x8xf32>, vector<1x8x8xf32> -> vector<1x8x16xf32>
    %110 = vector.shape_cast %109 : vector<1x8x16xf32> to vector<8x16xf32>
    %c0_40 = arith.constant 0 : index
    %c0_41 = arith.constant 0 : index
    %111 = vector.load %arg12[%c0_40, %c0_41] : memref<16x8xf32, #tpu.memory_space<vmem>>, vector<16x8xf32>
    %cst_42 = arith.constant dense<0.000000e+00> : vector<8x8xf32>
    %112 = tpu.matmul %108, %111, %cst_42 {dimension_numbers = #tpu.dot_dimension_numbers<[1], [0], [0], [1], [0, 0, 1, 1], [], []>} : vector<8x16xf32>, vector<16x8xf32>, vector<8x8xf32> -> vector<8x8xf32>
    %c0_43 = arith.constant 0 : index
    %c0_44 = arith.constant 0 : index
    %113 = vector.load %arg14[%c0_43, %c0_44] : memref<1x8xf32, #tpu.memory_space<vmem>>, vector<1x8xf32>
    %114 = vector.broadcast %113 : vector<1x8xf32> to vector<8x8xf32>
    %115 = arith.addf %112, %114 : vector<8x8xf32>
    %c0_45 = arith.constant 0 : index
    %c0_46 = arith.constant 0 : index
    %116 = vector.load %arg13[%c0_45, %c0_46] : memref<16x8xf32, #tpu.memory_space<vmem>>, vector<16x8xf32>
    %cst_47 = arith.constant dense<0.000000e+00> : vector<8x8xf32>
    %117 = tpu.matmul %110, %116, %cst_47 {dimension_numbers = #tpu.dot_dimension_numbers<[1], [0], [0], [1], [0, 0, 1, 1], [], []>} : vector<8x16xf32>, vector<16x8xf32>, vector<8x8xf32> -> vector<8x8xf32>
    %c0_48 = arith.constant 0 : index
    %c0_49 = arith.constant 0 : index
    %118 = vector.load %arg14[%c0_48, %c0_49] : memref<1x8xf32, #tpu.memory_space<vmem>>, vector<1x8xf32>
    %119 = vector.broadcast %118 : vector<1x8xf32> to vector<8x8xf32>
    %120 = arith.addf %117, %119 : vector<8x8xf32>
    %cst_50 = arith.constant 0.000000e+00 : f32
    %121 = vector.broadcast %cst_50 : f32 to vector<8x8xf32>
    %122 = arith.cmpf ogt, %115, %121 : vector<8x8xf32>
    %cst_51 = arith.constant 2.000000e-01 : f32
    %123 = vector.broadcast %cst_51 : f32 to vector<8x8xf32>
    %124 = arith.mulf %123, %115 : vector<8x8xf32>
    %125 = arith.select %122, %115, %124 : vector<8x8xi1>, vector<8x8xf32>
    %cst_52 = arith.constant 0.000000e+00 : f32
    %126 = vector.broadcast %cst_52 : f32 to vector<8x8xf32>
    %127 = arith.cmpf ogt, %120, %126 : vector<8x8xf32>
    %cst_53 = arith.constant 2.000000e-01 : f32
    %128 = vector.broadcast %cst_53 : f32 to vector<8x8xf32>
    %129 = arith.mulf %128, %120 : vector<8x8xf32>
    %130 = arith.select %127, %120, %129 : vector<8x8xi1>, vector<8x8xf32>
    %131 = vector.shape_cast %125 : vector<8x8xf32> to vector<1x8x8xf32>
    %132 = vector.shape_cast %130 : vector<8x8xf32> to vector<1x8x8xf32>
    %133 = vector.shape_cast %131 : vector<1x8x8xf32> to vector<1x1x8x8xf32>
    %134 = vector.shape_cast %132 : vector<1x8x8xf32> to vector<1x1x8x8xf32>
    %135 = tpu.concatenate %133, %134 in 1 : vector<1x1x8x8xf32>, vector<1x1x8x8xf32> -> vector<1x2x8x8xf32>
    %136 = vector.shape_cast %135 : vector<1x2x8x8xf32> to vector<2x8x8xf32>
    %137 = vector.extract_strided_slice %136 {offsets = [1, 0, 0], sizes = [1, 8, 8], strides = [1, 1, 1]} : vector<2x8x8xf32> to vector<1x8x8xf32>
    %138 = vector.shape_cast %137 : vector<1x8x8xf32> to vector<8x8xf32>
    %cst_54 = arith.constant 0.000000e+00 : f32
    %139 = vector.broadcast %cst_54 : f32 to vector<1x8xf32>
    %140 = vector.extract_strided_slice %138 {offsets = [0, 0], sizes = [7, 8], strides = [1, 1]} : vector<8x8xf32> to vector<7x8xf32>
    %141 = tpu.concatenate %139, %140 in 0 : vector<1x8xf32>, vector<7x8xf32> -> vector<8x8xf32>
    %142 = vector.shape_cast %141 : vector<8x8xf32> to vector<1x8x8xf32>
    %143 = vector.extract_strided_slice %136 {offsets = [0, 0, 0], sizes = [1, 8, 8], strides = [1, 1, 1]} : vector<2x8x8xf32> to vector<1x8x8xf32>
    %144 = vector.shape_cast %143 : vector<1x8x8xf32> to vector<8x8xf32>
    %145 = vector.extract_strided_slice %144 {offsets = [1, 0], sizes = [7, 8], strides = [1, 1]} : vector<8x8xf32> to vector<7x8xf32>
    %cst_55 = arith.constant 0.000000e+00 : f32
    %146 = vector.broadcast %cst_55 : f32 to vector<1x8xf32>
    %147 = tpu.concatenate %145, %146 in 0 : vector<7x8xf32>, vector<1x8xf32> -> vector<8x8xf32>
    %148 = vector.shape_cast %147 : vector<8x8xf32> to vector<1x8x8xf32>
    %149 = vector.extract_strided_slice %136 {offsets = [0, 0, 0], sizes = [1, 8, 8], strides = [1, 1, 1]} : vector<2x8x8xf32> to vector<1x8x8xf32>
    %150 = tpu.concatenate %142, %149 in 0 : vector<1x8x8xf32>, vector<1x8x8xf32> -> vector<2x8x8xf32>
    %151 = vector.extract_strided_slice %136 {offsets = [1, 0, 0], sizes = [1, 8, 8], strides = [1, 1, 1]} : vector<2x8x8xf32> to vector<1x8x8xf32>
    %152 = tpu.concatenate %151, %148 in 0 : vector<1x8x8xf32>, vector<1x8x8xf32> -> vector<2x8x8xf32>
    %153 = tpu.concatenate %150, %136 in 2 : vector<2x8x8xf32>, vector<2x8x8xf32> -> vector<2x8x16xf32>
    %154 = vector.shape_cast %153 : vector<2x8x16xf32> to vector<16x16xf32>
    %155 = tpu.concatenate %136, %152 in 2 : vector<2x8x8xf32>, vector<2x8x8xf32> -> vector<2x8x16xf32>
    %156 = vector.shape_cast %155 : vector<2x8x16xf32> to vector<16x16xf32>
    %c0_56 = arith.constant 0 : index
    %c0_57 = arith.constant 0 : index
    %157 = vector.load %arg15[%c0_56, %c0_57] : memref<16x4xf32, #tpu.memory_space<vmem>>, vector<16x4xf32>
    %cst_58 = arith.constant dense<0.000000e+00> : vector<16x4xf32>
    %158 = tpu.matmul %154, %157, %cst_58 {dimension_numbers = #tpu.dot_dimension_numbers<[1], [0], [0], [1], [0, 0, 1, 1], [], []>} : vector<16x16xf32>, vector<16x4xf32>, vector<16x4xf32> -> vector<16x4xf32>
    %c0_59 = arith.constant 0 : index
    %c0_60 = arith.constant 0 : index
    %159 = vector.load %arg17[%c0_59, %c0_60] : memref<1x4xf32, #tpu.memory_space<vmem>>, vector<1x4xf32>
    %160 = vector.broadcast %159 : vector<1x4xf32> to vector<16x4xf32>
    %161 = arith.addf %158, %160 : vector<16x4xf32>
    %c0_61 = arith.constant 0 : index
    %c0_62 = arith.constant 0 : index
    %162 = vector.load %arg16[%c0_61, %c0_62] : memref<16x4xf32, #tpu.memory_space<vmem>>, vector<16x4xf32>
    %cst_63 = arith.constant dense<0.000000e+00> : vector<16x4xf32>
    %163 = tpu.matmul %156, %162, %cst_63 {dimension_numbers = #tpu.dot_dimension_numbers<[1], [0], [0], [1], [0, 0, 1, 1], [], []>} : vector<16x16xf32>, vector<16x4xf32>, vector<16x4xf32> -> vector<16x4xf32>
    %c0_64 = arith.constant 0 : index
    %c0_65 = arith.constant 0 : index
    %164 = vector.load %arg17[%c0_64, %c0_65] : memref<1x4xf32, #tpu.memory_space<vmem>>, vector<1x4xf32>
    %165 = vector.broadcast %164 : vector<1x4xf32> to vector<16x4xf32>
    %166 = arith.addf %163, %165 : vector<16x4xf32>
    %cst_66 = arith.constant 0.000000e+00 : f32
    %167 = vector.broadcast %cst_66 : f32 to vector<16x4xf32>
    %168 = arith.cmpf ogt, %161, %167 : vector<16x4xf32>
    %cst_67 = arith.constant 2.000000e-01 : f32
    %169 = vector.broadcast %cst_67 : f32 to vector<16x4xf32>
    %170 = arith.mulf %169, %161 : vector<16x4xf32>
    %171 = arith.select %168, %161, %170 : vector<16x4xi1>, vector<16x4xf32>
    %cst_68 = arith.constant 0.000000e+00 : f32
    %172 = vector.broadcast %cst_68 : f32 to vector<16x4xf32>
    %173 = arith.cmpf ogt, %166, %172 : vector<16x4xf32>
    %cst_69 = arith.constant 2.000000e-01 : f32
    %174 = vector.broadcast %cst_69 : f32 to vector<16x4xf32>
    %175 = arith.mulf %174, %166 : vector<16x4xf32>
    %176 = arith.select %173, %166, %175 : vector<16x4xi1>, vector<16x4xf32>
    %177 = vector.shape_cast %171 : vector<16x4xf32> to vector<2x8x4xf32>
    %178 = vector.shape_cast %176 : vector<16x4xf32> to vector<2x8x4xf32>
    %179 = vector.shape_cast %177 : vector<2x8x4xf32> to vector<2x1x8x4xf32>
    %180 = vector.shape_cast %178 : vector<2x8x4xf32> to vector<2x1x8x4xf32>
    %181 = tpu.concatenate %179, %180 in 1 : vector<2x1x8x4xf32>, vector<2x1x8x4xf32> -> vector<2x2x8x4xf32>
    %182 = vector.shape_cast %181 : vector<2x2x8x4xf32> to vector<4x8x4xf32>
    %183 = vector.extract_strided_slice %182 {offsets = [3, 0, 0], sizes = [1, 8, 4], strides = [1, 1, 1]} : vector<4x8x4xf32> to vector<1x8x4xf32>
    %184 = vector.shape_cast %183 : vector<1x8x4xf32> to vector<8x4xf32>
    %cst_70 = arith.constant 0.000000e+00 : f32
    %185 = vector.broadcast %cst_70 : f32 to vector<1x4xf32>
    %186 = vector.extract_strided_slice %184 {offsets = [0, 0], sizes = [7, 4], strides = [1, 1]} : vector<8x4xf32> to vector<7x4xf32>
    %187 = tpu.concatenate %185, %186 in 0 : vector<1x4xf32>, vector<7x4xf32> -> vector<8x4xf32>
    %188 = vector.shape_cast %187 : vector<8x4xf32> to vector<1x8x4xf32>
    %189 = vector.extract_strided_slice %182 {offsets = [0, 0, 0], sizes = [1, 8, 4], strides = [1, 1, 1]} : vector<4x8x4xf32> to vector<1x8x4xf32>
    %190 = vector.shape_cast %189 : vector<1x8x4xf32> to vector<8x4xf32>
    %191 = vector.extract_strided_slice %190 {offsets = [1, 0], sizes = [7, 4], strides = [1, 1]} : vector<8x4xf32> to vector<7x4xf32>
    %cst_71 = arith.constant 0.000000e+00 : f32
    %192 = vector.broadcast %cst_71 : f32 to vector<1x4xf32>
    %193 = tpu.concatenate %191, %192 in 0 : vector<7x4xf32>, vector<1x4xf32> -> vector<8x4xf32>
    %194 = vector.shape_cast %193 : vector<8x4xf32> to vector<1x8x4xf32>
    %195 = vector.extract_strided_slice %182 {offsets = [0, 0, 0], sizes = [3, 8, 4], strides = [1, 1, 1]} : vector<4x8x4xf32> to vector<3x8x4xf32>
    %196 = tpu.concatenate %188, %195 in 0 : vector<1x8x4xf32>, vector<3x8x4xf32> -> vector<4x8x4xf32>
    %197 = vector.extract_strided_slice %182 {offsets = [1, 0, 0], sizes = [3, 8, 4], strides = [1, 1, 1]} : vector<4x8x4xf32> to vector<3x8x4xf32>
    %198 = tpu.concatenate %197, %194 in 0 : vector<3x8x4xf32>, vector<1x8x4xf32> -> vector<4x8x4xf32>
    %199 = tpu.concatenate %196, %182, %198 in 2 : vector<4x8x4xf32>, vector<4x8x4xf32>, vector<4x8x4xf32> -> vector<4x8x12xf32>
    %200 = vector.shape_cast %199 : vector<4x8x12xf32> to vector<32x12xf32>
    %c0_72 = arith.constant 0 : index
    %c0_73 = arith.constant 0 : index
    %201 = vector.load %arg18[%c0_72, %c0_73] : memref<12x4xf32, #tpu.memory_space<vmem>>, vector<12x4xf32>
    %cst_74 = arith.constant dense<0.000000e+00> : vector<32x4xf32>
    %202 = tpu.matmul %200, %201, %cst_74 {dimension_numbers = #tpu.dot_dimension_numbers<[1], [0], [0], [1], [0, 0, 1, 1], [], []>} : vector<32x12xf32>, vector<12x4xf32>, vector<32x4xf32> -> vector<32x4xf32>
    %c0_75 = arith.constant 0 : index
    %c0_76 = arith.constant 0 : index
    %203 = vector.load %arg19[%c0_75, %c0_76] : memref<1x4xf32, #tpu.memory_space<vmem>>, vector<1x4xf32>
    %204 = vector.broadcast %203 : vector<1x4xf32> to vector<32x4xf32>
    %205 = arith.addf %202, %204 : vector<32x4xf32>
    %206 = vector.shape_cast %205 : vector<32x4xf32> to vector<4x8x4xf32>
    %207 = vector.extract_strided_slice %206 {offsets = [0, 0, 0], sizes = [1, 8, 4], strides = [1, 1, 1]} : vector<4x8x4xf32> to vector<1x8x4xf32>
    %208 = vector.shape_cast %207 : vector<1x8x4xf32> to vector<8x4xf32>
    %c0_77 = arith.constant 0 : index
    %c0_78 = arith.constant 0 : index
    %c0_79 = arith.constant 0 : index
    %209 = vector.load %arg20[%c0_77, %c0_78, %c0_79] : memref<1x8x16xf32, #tpu.memory_space<vmem>>, vector<1x8x4xf32>
    %210 = vector.shape_cast %209 : vector<1x8x4xf32> to vector<8x4xf32>
    %211 = vector.shape_cast %208 : vector<8x4xf32> to vector<1x8x4xf32>
    tpu.vector_store %arg20[%c0_77, %c0_78, %c0_79], %211 {strides = array<i32>} : memref<1x8x16xf32, #tpu.memory_space<vmem>>, vector<1x8x4xf32>,
    %212 = vector.extract_strided_slice %206 {offsets = [1, 0, 0], sizes = [1, 8, 4], strides = [1, 1, 1]} : vector<4x8x4xf32> to vector<1x8x4xf32>
    %213 = vector.shape_cast %212 : vector<1x8x4xf32> to vector<8x4xf32>
    %c0_80 = arith.constant 0 : index
    %c0_81 = arith.constant 0 : index
    %c4 = arith.constant 4 : index
    %214 = vector.load %arg20[%c0_80, %c0_81, %c4] : memref<1x8x16xf32, #tpu.memory_space<vmem>>, vector<1x8x4xf32>
    %215 = vector.shape_cast %214 : vector<1x8x4xf32> to vector<8x4xf32>
    %216 = vector.shape_cast %213 : vector<8x4xf32> to vector<1x8x4xf32>
    tpu.vector_store %arg20[%c0_80, %c0_81, %c4], %216 {strides = array<i32>} : memref<1x8x16xf32, #tpu.memory_space<vmem>>, vector<1x8x4xf32>,
    %217 = vector.extract_strided_slice %206 {offsets = [2, 0, 0], sizes = [1, 8, 4], strides = [1, 1, 1]} : vector<4x8x4xf32> to vector<1x8x4xf32>
    %218 = vector.shape_cast %217 : vector<1x8x4xf32> to vector<8x4xf32>
    %c0_82 = arith.constant 0 : index
    %c0_83 = arith.constant 0 : index
    %c8 = arith.constant 8 : index
    %219 = vector.load %arg20[%c0_82, %c0_83, %c8] : memref<1x8x16xf32, #tpu.memory_space<vmem>>, vector<1x8x4xf32>
    %220 = vector.shape_cast %219 : vector<1x8x4xf32> to vector<8x4xf32>
    %221 = vector.shape_cast %218 : vector<8x4xf32> to vector<1x8x4xf32>
    tpu.vector_store %arg20[%c0_82, %c0_83, %c8], %221 {strides = array<i32>} : memref<1x8x16xf32, #tpu.memory_space<vmem>>, vector<1x8x4xf32>,
    %222 = vector.extract_strided_slice %206 {offsets = [3, 0, 0], sizes = [1, 8, 4], strides = [1, 1, 1]} : vector<4x8x4xf32> to vector<1x8x4xf32>
    %223 = vector.shape_cast %222 : vector<1x8x4xf32> to vector<8x4xf32>
    %c0_84 = arith.constant 0 : index
    %c0_85 = arith.constant 0 : index
    %c12 = arith.constant 12 : index
    %224 = vector.load %arg20[%c0_84, %c0_85, %c12] : memref<1x8x16xf32, #tpu.memory_space<vmem>>, vector<1x8x4xf32>
    %225 = vector.shape_cast %224 : vector<1x8x4xf32> to vector<8x4xf32>
    %226 = vector.shape_cast %223 : vector<8x4xf32> to vector<1x8x4xf32>
    tpu.vector_store %arg20[%c0_84, %c0_85, %c12], %226 {strides = array<i32>} : memref<1x8x16xf32, #tpu.memory_space<vmem>>, vector<1x8x4xf32>,
    return
  }
  func.func @transform_0(%arg0: i32) -> (i32, i32, i32) {
    %c0_i32 = arith.constant 0 : i32
    %c0_i32_0 = arith.constant 0 : i32
    %c0_i32_1 = arith.constant 0 : i32
    return %arg0, %c0_i32, %c0_i32_0 : i32, i32, i32
  }
  func.func @transform_1(%arg0: i32) -> (i32, i32) {
    %c0_i32 = arith.constant 0 : i32
    %c0_i32_0 = arith.constant 0 : i32
    %c0_i32_1 = arith.constant 0 : i32
    return %c0_i32, %c0_i32_0 : i32, i32
  }
  func.func @transform_2(%arg0: i32) -> (i32, i32) {
    %c0_i32 = arith.constant 0 : i32
    %c0_i32_0 = arith.constant 0 : i32
    %c0_i32_1 = arith.constant 0 : i32
    return %c0_i32, %c0_i32_0 : i32, i32
  }
  func.func @transform_3(%arg0: i32) -> (i32, i32) {
    %c0_i32 = arith.constant 0 : i32
    %c0_i32_0 = arith.constant 0 : i32
    %c0_i32_1 = arith.constant 0 : i32
    return %c0_i32, %c0_i32_0 : i32, i32
  }
  func.func @transform_4(%arg0: i32) -> (i32, i32) {
    %c0_i32 = arith.constant 0 : i32
    %c0_i32_0 = arith.constant 0 : i32
    %c0_i32_1 = arith.constant 0 : i32
    return %c0_i32, %c0_i32_0 : i32, i32
  }
  func.func @transform_5(%arg0: i32) -> (i32, i32) {
    %c0_i32 = arith.constant 0 : i32
    %c0_i32_0 = arith.constant 0 : i32
    %c0_i32_1 = arith.constant 0 : i32
    return %c0_i32, %c0_i32_0 : i32, i32
  }
  func.func @transform_6(%arg0: i32) -> (i32, i32) {
    %c0_i32 = arith.constant 0 : i32
    %c0_i32_0 = arith.constant 0 : i32
    %c0_i32_1 = arith.constant 0 : i32
    return %c0_i32, %c0_i32_0 : i32, i32
  }
  func.func @transform_7(%arg0: i32) -> (i32, i32) {
    %c0_i32 = arith.constant 0 : i32
    %c0_i32_0 = arith.constant 0 : i32
    %c0_i32_1 = arith.constant 0 : i32
    return %c0_i32, %c0_i32_0 : i32, i32
  }
  func.func @transform_8(%arg0: i32) -> (i32, i32) {
    %c0_i32 = arith.constant 0 : i32
    %c0_i32_0 = arith.constant 0 : i32
    %c0_i32_1 = arith.constant 0 : i32
    return %c0_i32, %c0_i32_0 : i32, i32
  }
  func.func @transform_9(%arg0: i32) -> (i32, i32) {
    %c0_i32 = arith.constant 0 : i32
    %c0_i32_0 = arith.constant 0 : i32
    %c0_i32_1 = arith.constant 0 : i32
    return %c0_i32, %c0_i32_0 : i32, i32
  }
  func.func @transform_10(%arg0: i32) -> (i32, i32) {
    %c0_i32 = arith.constant 0 : i32
    %c0_i32_0 = arith.constant 0 : i32
    %c0_i32_1 = arith.constant 0 : i32
    return %c0_i32, %c0_i32_0 : i32, i32
  }
  func.func @transform_11(%arg0: i32) -> (i32, i32) {
    %c0_i32 = arith.constant 0 : i32
    %c0_i32_0 = arith.constant 0 : i32
    %c0_i32_1 = arith.constant 0 : i32
    return %c0_i32, %c0_i32_0 : i32, i32
  }
  func.func @transform_12(%arg0: i32) -> (i32, i32) {
    %c0_i32 = arith.constant 0 : i32
    %c0_i32_0 = arith.constant 0 : i32
    %c0_i32_1 = arith.constant 0 : i32
    return %c0_i32, %c0_i32_0 : i32, i32
  }
  func.func @transform_13(%arg0: i32) -> (i32, i32) {
    %c0_i32 = arith.constant 0 : i32
    %c0_i32_0 = arith.constant 0 : i32
    %c0_i32_1 = arith.constant 0 : i32
    return %c0_i32, %c0_i32_0 : i32, i32
  }
  func.func @transform_14(%arg0: i32) -> (i32, i32) {
    %c0_i32 = arith.constant 0 : i32
    %c0_i32_0 = arith.constant 0 : i32
    %c0_i32_1 = arith.constant 0 : i32
    return %c0_i32, %c0_i32_0 : i32, i32
  }
  func.func @transform_15(%arg0: i32) -> (i32, i32) {
    %c0_i32 = arith.constant 0 : i32
    %c0_i32_0 = arith.constant 0 : i32
    %c0_i32_1 = arith.constant 0 : i32
    return %c0_i32, %c0_i32_0 : i32, i32
  }
  func.func @transform_16(%arg0: i32) -> (i32, i32) {
    %c0_i32 = arith.constant 0 : i32
    %c0_i32_0 = arith.constant 0 : i32
    %c0_i32_1 = arith.constant 0 : i32
    return %c0_i32, %c0_i32_0 : i32, i32
  }
  func.func @transform_17(%arg0: i32) -> (i32, i32) {
    %c0_i32 = arith.constant 0 : i32
    %c0_i32_0 = arith.constant 0 : i32
    %c0_i32_1 = arith.constant 0 : i32
    return %c0_i32, %c0_i32_0 : i32, i32
  }
  func.func @transform_18(%arg0: i32) -> (i32, i32) {
    %c0_i32 = arith.constant 0 : i32
    %c0_i32_0 = arith.constant 0 : i32
    %c0_i32_1 = arith.constant 0 : i32
    return %c0_i32, %c0_i32_0 : i32, i32
  }
  func.func @transform_19(%arg0: i32) -> (i32, i32, i32) {
    %c0_i32 = arith.constant 0 : i32
    %c0_i32_0 = arith.constant 0 : i32
    %c0_i32_1 = arith.constant 0 : i32
    return %arg0, %c0_i32, %c0_i32_0 : i32, i32, i32
  }
}

</mosaic_0001>

<llo_original>
// kernel: tpu_custom_call.1
$region0: #{tpu_custom_call.1}
  #allocation0 [shape = 'u32[]', space=smem, size = 0x4, offset = 0x4, fixed_abs, tag = 'smem constant byte address 0x4 - core index']
  #allocation1 [shape = 'u32[72,128]{1,0:T(1,128)}', space=vmem, size = 0x9000, scoped, tag = 'internal scratch']
  %s0 = inlined_call_operand.vmem [shape: f32[2,8,6], index: 0, kind: input, shape index: {}]
  %s1 = inlined_call_operand.vmem [shape: f32[18,8], index: 1, kind: input, shape index: {}]
  %s2 = inlined_call_operand.vmem [shape: f32[1,8], index: 2, kind: input, shape index: {}]
  %s3 = inlined_call_operand.vmem [shape: f32[24,8], index: 3, kind: input, shape index: {}]
  %s4 = inlined_call_operand.vmem [shape: f32[1,8], index: 4, kind: input, shape index: {}]
  %s5 = inlined_call_operand.vmem [shape: f32[24,8], index: 5, kind: input, shape index: {}]
  %s6 = inlined_call_operand.vmem [shape: f32[1,8], index: 6, kind: input, shape index: {}]
  %s7 = inlined_call_operand.vmem [shape: f32[24,8], index: 7, kind: input, shape index: {}]
  %s8 = inlined_call_operand.vmem [shape: f32[1,8], index: 8, kind: input, shape index: {}]
  %s9 = inlined_call_operand.vmem [shape: f32[24,8], index: 9, kind: input, shape index: {}]
  %s10 = inlined_call_operand.vmem [shape: f32[1,8], index: 10, kind: input, shape index: {}]
  %s11 = inlined_call_operand.vmem [shape: f32[16,8], index: 11, kind: input, shape index: {}]
  %s12 = inlined_call_operand.vmem [shape: f32[16,8], index: 12, kind: input, shape index: {}]
  %s13 = inlined_call_operand.vmem [shape: f32[1,8], index: 13, kind: input, shape index: {}]
  %s14 = inlined_call_operand.vmem [shape: f32[16,4], index: 14, kind: input, shape index: {}]
  %s15 = inlined_call_operand.vmem [shape: f32[16,4], index: 15, kind: input, shape index: {}]
  %s16 = inlined_call_operand.vmem [shape: f32[1,4], index: 16, kind: input, shape index: {}]
  %s17 = inlined_call_operand.vmem [shape: f32[12,4], index: 17, kind: input, shape index: {}]
  %s18 = inlined_call_operand.vmem [shape: f32[1,4], index: 18, kind: input, shape index: {}]
  %s19 = inlined_call_operand.hbm [shape: f32[2,8,16], index: 19, kind: output, shape index: {}]
  %s20 = sld [smem:[#allocation0]]
  $region109: #{tpu_custom_call.1} parent=0
    _
  %s22 = ssub.s32 1, %s20
  %s23 = scalar_select 0, %s22, %s20
  $region1: #{tpu_custom_call.1} parent=0
    #allocation2 [shape = 'u8[8192]{0}', space=vmem, size = 0x2000, scoped, tag = 'output window, operand 0']
    #allocation3 [shape = 's32[2]{0}', space=sflag, size = 0x8, scoped, tag = 'scoped memory for tpu_custom_call.1']
    %24 = vsyncpa [#allocation3], 0
    %s25 = scalar_lea.sflag [#allocation3], 1
    %26 = vsyncpa %s25, 0
    loop: start=0, step=1, limit=4
    $region2: #{tpu_custom_call.1} parent=1 // loop_pre_header
      _
    $region3: #{tpu_custom_call.1} parent=1 // loop_header
      %s28 = sphi 0, %s32
      %p29 = scmp.ge.s32.totalorder %s28, 4
      %s38 = sphi 0, %s40
      %s41 = sphi 0, %s38
      %s42 = sphi 0, %s41
      %s58 = sphi 0, %s42
      %s62 = sphi 0, %s62
      %s64 = sphi 0, %s62
      %s65 = sphi 0, %s64
      %s79 = sphi 0, %s65
      %s83 = sphi 0, %s83
      %s85 = sphi 0, %s83
      %s86 = sphi 0, %s85
      %s100 = sphi 0, %s86
      %s104 = sphi 0, %s104
      %s106 = sphi 0, %s104
      %s107 = sphi 0, %s106
      %s121 = sphi 0, %s107
      %s125 = sphi 0, %s125
      %s127 = sphi 0, %s125
      %s128 = sphi 0, %s127
      %s142 = sphi 0, %s128
      %s146 = sphi 0, %s146
      %s148 = sphi 0, %s146
      %s149 = sphi 0, %s148
      %s163 = sphi 0, %s149
      %s167 = sphi 0, %s167
      %s169 = sphi 0, %s167
      %s170 = sphi 0, %s169
      %s184 = sphi 0, %s170
      %s188 = sphi 0, %s188
      %s190 = sphi 0, %s188
      %s191 = sphi 0, %s190
      %s205 = sphi 0, %s191
      %s209 = sphi 0, %s209
      %s211 = sphi 0, %s209
      %s212 = sphi 0, %s211
      %s226 = sphi 0, %s212
      %s230 = sphi 0, %s230
      %s232 = sphi 0, %s230
      %s233 = sphi 0, %s232
      %s247 = sphi 0, %s233
      %s251 = sphi 0, %s251
      %s253 = sphi 0, %s251
      %s254 = sphi 0, %s253
      %s268 = sphi 0, %s254
      %s272 = sphi 0, %s272
      %s274 = sphi 0, %s272
      %s275 = sphi 0, %s274
      %s289 = sphi 0, %s275
      %s293 = sphi 0, %s293
      %s295 = sphi 0, %s293
      %s296 = sphi 0, %s295
      %s310 = sphi 0, %s296
      %s314 = sphi 0, %s314
      %s316 = sphi 0, %s314
      %s317 = sphi 0, %s316
      %s331 = sphi 0, %s317
      %s335 = sphi 0, %s335
      %s337 = sphi 0, %s335
      %s338 = sphi 0, %s337
      %s352 = sphi 0, %s338
      %s356 = sphi 0, %s356
      %s358 = sphi 0, %s356
      %s359 = sphi 0, %s358
      %s373 = sphi 0, %s359
      %s377 = sphi 0, %s377
      %s379 = sphi 0, %s377
      %s380 = sphi 0, %s379
      %s394 = sphi 0, %s380
      %s398 = sphi 0, %s398
      %s400 = sphi 0, %s398
      %s401 = sphi 0, %s400
      %s415 = sphi 0, %s401
      %s419 = sphi 0, %s419
      %s421 = sphi 0, %s419
      %s422 = sphi 0, %s421
      %s436 = sphi 0, %s422
      %s442 = sphi 0, %s444
      %s445 = sphi 0, %s442
      %s446 = sphi 0, %s445
      %s462 = sphi 0, %s446
    $region4: #{tpu_custom_call.1} parent=1 // loop_header_branch
      %31 = sbr.rel (%p29) target = $region8
    $region5: #{tpu_custom_call.1} parent=1 // loop_body
      %s33 = ssub.s32 %s28, 1
      %s34 = ssub.s32 %s28, 2
      %s35 = sadd.s32 %s28, 1
      %s36 = ssub.s32 %s28, %s35
      %p37 = scmp.eq.s32.totalorder %s36, 0
      %s39 = sadd.s32 %s38, 1
      %s40 = scalar_select %p37, %s38, %s39
      %p43 = pneg %p37
      %p44 = scmp.eq.s32.totalorder %s28, 1
      %p45 = por %p43, %p44
      %p46 = scmp.ne.s32.totalorder %s38, %s41
      %p47 = scmp.eq.s32.totalorder %s28, 0
      %p48 = por %p46, %p47
      %p49 = scmp.ne.s32.totalorder %s38, %s41
      %p50 = scmp.eq.s32.totalorder %s33, 1
      %p51 = por %p49, %p50
      %p52 = scmp.ne.s32.totalorder %s41, %s42
      %p53 = scmp.eq.s32.totalorder %s33, 0
      %p54 = por %p52, %p53
      %p55 = scmp.ne.s32.totalorder %s41, %s42
      %p56 = scmp.eq.s32.totalorder %s34, 1
      %p57 = por %p55, %p56
      %p59 = scmp.ne.s32.totalorder %s42, %s58
      %p60 = scmp.eq.s32.totalorder %s34, 0
      %p61 = por %p59, %p60
      %s63 = sadd.s32 %s62, 1
      %p66 = scmp.eq.s32.totalorder %s28, 1
      %p67 = scmp.ne.s32.totalorder %s62, %s64
      %p68 = scmp.eq.s32.totalorder %s28, 0
      %p69 = por %p67, %p68
      %p70 = scmp.ne.s32.totalorder %s62, %s64
      %p71 = scmp.eq.s32.totalorder %s33, 1
      %p72 = por %p70, %p71
      %p73 = scmp.ne.s32.totalorder %s64, %s65
      %p74 = scmp.eq.s32.totalorder %s33, 0
      %p75 = por %p73, %p74
      %p76 = scmp.ne.s32.totalorder %s64, %s65
      %p77 = scmp.eq.s32.totalorder %s34, 1
      %p78 = por %p76, %p77
      %p80 = scmp.ne.s32.totalorder %s65, %s79
      %p81 = scmp.eq.s32.totalorder %s34, 0
      %p82 = por %p80, %p81
      %s84 = sadd.s32 %s83, 1
      %p87 = scmp.eq.s32.totalorder %s28, 1
      %p88 = scmp.ne.s32.totalorder %s83, %s85
      %p89 = scmp.eq.s32.totalorder %s28, 0
      %p90 = por %p88, %p89
      %p91 = scmp.ne.s32.totalorder %s83, %s85
      %p92 = scmp.eq.s32.totalorder %s33, 1
      %p93 = por %p91, %p92
      %p94 = scmp.ne.s32.totalorder %s85, %s86
      %p95 = scmp.eq.s32.totalorder %s33, 0
      %p96 = por %p94, %p95
      %p97 = scmp.ne.s32.totalorder %s85, %s86
      %p98 = scmp.eq.s32.totalorder %s34, 1
      %p99 = por %p97, %p98
      %p101 = scmp.ne.s32.totalorder %s86, %s100
      %p102 = scmp.eq.s32.totalorder %s34, 0
      %p103 = por %p101, %p102
      %s105 = sadd.s32 %s104, 1
      %p108 = scmp.eq.s32.totalorder %s28, 1
      %p109 = scmp.ne.s32.totalorder %s104, %s106
      %p110 = scmp.eq.s32.totalorder %s28, 0
      %p111 = por %p109, %p110
      %p112 = scmp.ne.s32.totalorder %s104, %s106
      %p113 = scmp.eq.s32.totalorder %s33, 1
      %p114 = por %p112, %p113
      %p115 = scmp.ne.s32.totalorder %s106, %s107
      %p116 = scmp.eq.s32.totalorder %s33, 0
      %p117 = por %p115, %p116
      %p118 = scmp.ne.s32.totalorder %s106, %s107
      %p119 = scmp.eq.s32.totalorder %s34, 1
      %p120 = por %p118, %p119
      %p122 = scmp.ne.s32.totalorder %s107, %s121
      %p123 = scmp.eq.s32.totalorder %s34, 0
      %p124 = por %p122, %p123
      %s126 = sadd.s32 %s125, 1
      %p129 = scmp.eq.s32.totalorder %s28, 1
      %p130 = scmp.ne.s32.totalorder %s125, %s127
      %p131 = scmp.eq.s32.totalorder %s28, 0
      %p132 = por %p130, %p131
      %p133 = scmp.ne.s32.totalorder %s125, %s127
      %p134 = scmp.eq.s32.totalorder %s33, 1
      %p135 = por %p133, %p134
      %p136 = scmp.ne.s32.totalorder %s127, %s128
      %p137 = scmp.eq.s32.totalorder %s33, 0
      %p138 = por %p136, %p137
      %p139 = scmp.ne.s32.totalorder %s127, %s128
      %p140 = scmp.eq.s32.totalorder %s34, 1
      %p141 = por %p139, %p140
      %p143 = scmp.ne.s32.totalorder %s128, %s142
      %p144 = scmp.eq.s32.totalorder %s34, 0
      %p145 = por %p143, %p144
      %s147 = sadd.s32 %s146, 1
      %p150 = scmp.eq.s32.totalorder %s28, 1
      %p151 = scmp.ne.s32.totalorder %s146, %s148
      %p152 = scmp.eq.s32.totalorder %s28, 0
      %p153 = por %p151, %p152
      %p154 = scmp.ne.s32.totalorder %s146, %s148
      %p155 = scmp.eq.s32.totalorder %s33, 1
      %p156 = por %p154, %p155
      %p157 = scmp.ne.s32.totalorder %s148, %s149
      %p158 = scmp.eq.s32.totalorder %s33, 0
      %p159 = por %p157, %p158
      %p160 = scmp.ne.s32.totalorder %s148, %s149
      %p161 = scmp.eq.s32.totalorder %s34, 1
      %p162 = por %p160, %p161
      %p164 = scmp.ne.s32.totalorder %s149, %s163
      %p165 = scmp.eq.s32.totalorder %s34, 0
      %p166 = por %p164, %p165
      %s168 = sadd.s32 %s167, 1
      %p171 = scmp.eq.s32.totalorder %s28, 1
      %p172 = scmp.ne.s32.totalorder %s167, %s169
      %p173 = scmp.eq.s32.totalorder %s28, 0
      %p174 = por %p172, %p173
      %p175 = scmp.ne.s32.totalorder %s167, %s169
      %p176 = scmp.eq.s32.totalorder %s33, 1
      %p177 = por %p175, %p176
      %p178 = scmp.ne.s32.totalorder %s169, %s170
      %p179 = scmp.eq.s32.totalorder %s33, 0
      %p180 = por %p178, %p179
      %p181 = scmp.ne.s32.totalorder %s169, %s170
      %p182 = scmp.eq.s32.totalorder %s34, 1
      %p183 = por %p181, %p182
      %p185 = scmp.ne.s32.totalorder %s170, %s184
      %p186 = scmp.eq.s32.totalorder %s34, 0
      %p187 = por %p185, %p186
      %s189 = sadd.s32 %s188, 1
      %p192 = scmp.eq.s32.totalorder %s28, 1
      %p193 = scmp.ne.s32.totalorder %s188, %s190
      %p194 = scmp.eq.s32.totalorder %s28, 0
      %p195 = por %p193, %p194
      %p196 = scmp.ne.s32.totalorder %s188, %s190
      %p197 = scmp.eq.s32.totalorder %s33, 1
      %p198 = por %p196, %p197
      %p199 = scmp.ne.s32.totalorder %s190, %s191
      %p200 = scmp.eq.s32.totalorder %s33, 0
      %p201 = por %p199, %p200
      %p202 = scmp.ne.s32.totalorder %s190, %s191
      %p203 = scmp.eq.s32.totalorder %s34, 1
      %p204 = por %p202, %p203
      %p206 = scmp.ne.s32.totalorder %s191, %s205
      %p207 = scmp.eq.s32.totalorder %s34, 0
      %p208 = por %p206, %p207
      %s210 = sadd.s32 %s209, 1
      %p213 = scmp.eq.s32.totalorder %s28, 1
      %p214 = scmp.ne.s32.totalorder %s209, %s211
      %p215 = scmp.eq.s32.totalorder %s28, 0
      %p216 = por %p214, %p215
      %p217 = scmp.ne.s32.totalorder %s209, %s211
      %p218 = scmp.eq.s32.totalorder %s33, 1
      %p219 = por %p217, %p218
      %p220 = scmp.ne.s32.totalorder %s211, %s212
      %p221 = scmp.eq.s32.totalorder %s33, 0
      %p222 = por %p220, %p221
      %p223 = scmp.ne.s32.totalorder %s211, %s212
      %p224 = scmp.eq.s32.totalorder %s34, 1
      %p225 = por %p223, %p224
      %p227 = scmp.ne.s32.totalorder %s212, %s226
      %p228 = scmp.eq.s32.totalorder %s34, 0
      %p229 = por %p227, %p228
      %s231 = sadd.s32 %s230, 1
      %p234 = scmp.eq.s32.totalorder %s28, 1
      %p235 = scmp.ne.s32.totalorder %s230, %s232
      %p236 = scmp.eq.s32.totalorder %s28, 0
      %p237 = por %p235, %p236
      %p238 = scmp.ne.s32.totalorder %s230, %s232
      %p239 = scmp.eq.s32.totalorder %s33, 1
      %p240 = por %p238, %p239
      %p241 = scmp.ne.s32.totalorder %s232, %s233
      %p242 = scmp.eq.s32.totalorder %s33, 0
      %p243 = por %p241, %p242
      %p244 = scmp.ne.s32.totalorder %s232, %s233
      %p245 = scmp.eq.s32.totalorder %s34, 1
      %p246 = por %p244, %p245
      %p248 = scmp.ne.s32.totalorder %s233, %s247
      %p249 = scmp.eq.s32.totalorder %s34, 0
      %p250 = por %p248, %p249
      %s252 = sadd.s32 %s251, 1
      %p255 = scmp.eq.s32.totalorder %s28, 1
      %p256 = scmp.ne.s32.totalorder %s251, %s253
      %p257 = scmp.eq.s32.totalorder %s28, 0
      %p258 = por %p256, %p257
      %p259 = scmp.ne.s32.totalorder %s251, %s253
      %p260 = scmp.eq.s32.totalorder %s33, 1
      %p261 = por %p259, %p260
      %p262 = scmp.ne.s32.totalorder %s253, %s254
      %p263 = scmp.eq.s32.totalorder %s33, 0
      %p264 = por %p262, %p263
      %p265 = scmp.ne.s32.totalorder %s253, %s254
      %p266 = scmp.eq.s32.totalorder %s34, 1
      %p267 = por %p265, %p266
      %p269 = scmp.ne.s32.totalorder %s254, %s268
      %p270 = scmp.eq.s32.totalorder %s34, 0
      %p271 = por %p269, %p270
      %s273 = sadd.s32 %s272, 1
      %p276 = scmp.eq.s32.totalorder %s28, 1
      %p277 = scmp.ne.s32.totalorder %s272, %s274
      %p278 = scmp.eq.s32.totalorder %s28, 0
      %p279 = por %p277, %p278
      %p280 = scmp.ne.s32.totalorder %s272, %s274
      %p281 = scmp.eq.s32.totalorder %s33, 1
      %p282 = por %p280, %p281
      %p283 = scmp.ne.s32.totalorder %s274, %s275
      %p284 = scmp.eq.s32.totalorder %s33, 0
      %p285 = por %p283, %p284
      %p286 = scmp.ne.s32.totalorder %s274, %s275
      %p287 = scmp.eq.s32.totalorder %s34, 1
      %p288 = por %p286, %p287
      %p290 = scmp.ne.s32.totalorder %s275, %s289
      %p291 = scmp.eq.s32.totalorder %s34, 0
      %p292 = por %p290, %p291
      %s294 = sadd.s32 %s293, 1
      %p297 = scmp.eq.s32.totalorder %s28, 1
      %p298 = scmp.ne.s32.totalorder %s293, %s295
      %p299 = scmp.eq.s32.totalorder %s28, 0
      %p300 = por %p298, %p299
      %p301 = scmp.ne.s32.totalorder %s293, %s295
      %p302 = scmp.eq.s32.totalorder %s33, 1
      %p303 = por %p301, %p302
      %p304 = scmp.ne.s32.totalorder %s295, %s296
      %p305 = scmp.eq.s32.totalorder %s33, 0
      %p306 = por %p304, %p305
      %p307 = scmp.ne.s32.totalorder %s295, %s296
      %p308 = scmp.eq.s32.totalorder %s34, 1
      %p309 = por %p307, %p308
      %p311 = scmp.ne.s32.totalorder %s296, %s310
      %p312 = scmp.eq.s32.totalorder %s34, 0
      %p313 = por %p311, %p312
      %s315 = sadd.s32 %s314, 1
      %p318 = scmp.eq.s32.totalorder %s28, 1
      %p319 = scmp.ne.s32.totalorder %s314, %s316
      %p320 = scmp.eq.s32.totalorder %s28, 0
      %p321 = por %p319, %p320
      %p322 = scmp.ne.s32.totalorder %s314, %s316
      %p323 = scmp.eq.s32.totalorder %s33, 1
      %p324 = por %p322, %p323
      %p325 = scmp.ne.s32.totalorder %s316, %s317
      %p326 = scmp.eq.s32.totalorder %s33, 0
      %p327 = por %p325, %p326
      %p328 = scmp.ne.s32.totalorder %s316, %s317
      %p329 = scmp.eq.s32.totalorder %s34, 1
      %p330 = por %p328, %p329
      %p332 = scmp.ne.s32.totalorder %s317, %s331
      %p333 = scmp.eq.s32.totalorder %s34, 0
      %p334 = por %p332, %p333
      %s336 = sadd.s32 %s335, 1
      %p339 = scmp.eq.s32.totalorder %s28, 1
      %p340 = scmp.ne.s32.totalorder %s335, %s337
      %p341 = scmp.eq.s32.totalorder %s28, 0
      %p342 = por %p340, %p341
      %p343 = scmp.ne.s32.totalorder %s335, %s337
      %p344 = scmp.eq.s32.totalorder %s33, 1
      %p345 = por %p343, %p344
      %p346 = scmp.ne.s32.totalorder %s337, %s338
      %p347 = scmp.eq.s32.totalorder %s33, 0
      %p348 = por %p346, %p347
      %p349 = scmp.ne.s32.totalorder %s337, %s338
      %p350 = scmp.eq.s32.totalorder %s34, 1
      %p351 = por %p349, %p350
      %p353 = scmp.ne.s32.totalorder %s338, %s352
      %p354 = scmp.eq.s32.totalorder %s34, 0
      %p355 = por %p353, %p354
      %s357 = sadd.s32 %s356, 1
      %p360 = scmp.eq.s32.totalorder %s28, 1
      %p361 = scmp.ne.s32.totalorder %s356, %s358
      %p362 = scmp.eq.s32.totalorder %s28, 0
      %p363 = por %p361, %p362
      %p364 = scmp.ne.s32.totalorder %s356, %s358
      %p365 = scmp.eq.s32.totalorder %s33, 1
      %p366 = por %p364, %p365
      %p367 = scmp.ne.s32.totalorder %s358, %s359
      %p368 = scmp.eq.s32.totalorder %s33, 0
      %p369 = por %p367, %p368
      %p370 = scmp.ne.s32.totalorder %s358, %s359
      %p371 = scmp.eq.s32.totalorder %s34, 1
      %p372 = por %p370, %p371
      %p374 = scmp.ne.s32.totalorder %s359, %s373
      %p375 = scmp.eq.s32.totalorder %s34, 0
      %p376 = por %p374, %p375
      %s378 = sadd.s32 %s377, 1
      %p381 = scmp.eq.s32.totalorder %s28, 1
      %p382 = scmp.ne.s32.totalorder %s377, %s379
      %p383 = scmp.eq.s32.totalorder %s28, 0
      %p384 = por %p382, %p383
      %p385 = scmp.ne.s32.totalorder %s377, %s379
      %p386 = scmp.eq.s32.totalorder %s33, 1
      %p387 = por %p385, %p386
      %p388 = scmp.ne.s32.totalorder %s379, %s380
      %p389 = scmp.eq.s32.totalorder %s33, 0
      %p390 = por %p388, %p389
      %p391 = scmp.ne.s32.totalorder %s379, %s380
      %p392 = scmp.eq.s32.totalorder %s34, 1
      %p393 = por %p391, %p392
      %p395 = scmp.ne.s32.totalorder %s380, %s394
      %p396 = scmp.eq.s32.totalorder %s34, 0
      %p397 = por %p395, %p396
      %s399 = sadd.s32 %s398, 1
      %p402 = scmp.eq.s32.totalorder %s28, 1
      %p403 = scmp.ne.s32.totalorder %s398, %s400
      %p404 = scmp.eq.s32.totalorder %s28, 0
      %p405 = por %p403, %p404
      %p406 = scmp.ne.s32.totalorder %s398, %s400
      %p407 = scmp.eq.s32.totalorder %s33, 1
      %p408 = por %p406, %p407
      %p409 = scmp.ne.s32.totalorder %s400, %s401
      %p410 = scmp.eq.s32.totalorder %s33, 0
      %p411 = por %p409, %p410
      %p412 = scmp.ne.s32.totalorder %s400, %s401
      %p413 = scmp.eq.s32.totalorder %s34, 1
      %p414 = por %p412, %p413
      %p416 = scmp.ne.s32.totalorder %s401, %s415
      %p417 = scmp.eq.s32.totalorder %s34, 0
      %p418 = por %p416, %p417
      %s420 = sadd.s32 %s419, 1
      %p423 = scmp.eq.s32.totalorder %s28, 1
      %p424 = scmp.ne.s32.totalorder %s419, %s421
      %p425 = scmp.eq.s32.totalorder %s28, 0
      %p426 = por %p424, %p425
      %p427 = scmp.ne.s32.totalorder %s419, %s421
      %p428 = scmp.eq.s32.totalorder %s33, 1
      %p429 = por %p427, %p428
      %p430 = scmp.ne.s32.totalorder %s421, %s422
      %p431 = scmp.eq.s32.totalorder %s33, 0
      %p432 = por %p430, %p431
      %p433 = scmp.ne.s32.totalorder %s421, %s422
      %p434 = scmp.eq.s32.totalorder %s34, 1
      %p435 = por %p433, %p434
      %p437 = scmp.ne.s32.totalorder %s422, %s436
      %p438 = scmp.eq.s32.totalorder %s34, 0
      %p439 = por %p437, %p438
      %s440 = ssub.s32 %s28, %s35
      %p441 = scmp.eq.s32.totalorder %s440, 0
      %s443 = sadd.s32 %s442, 1
      %s444 = scalar_select %p441, %s442, %s443
      %p447 = pneg %p441
      %p448 = scmp.eq.s32.totalorder %s28, 1
      %p449 = por %p447, %p448
      %p450 = scmp.ne.s32.totalorder %s442, %s445
      %p451 = scmp.eq.s32.totalorder %s28, 0
      %p452 = por %p450, %p451
      %p453 = scmp.ne.s32.totalorder %s442, %s445
      %p454 = scmp.eq.s32.totalorder %s33, 1
      %p455 = por %p453, %p454
      %p456 = scmp.ne.s32.totalorder %s445, %s446
      %p457 = scmp.eq.s32.totalorder %s33, 0
      %p458 = por %p456, %p457
      %p459 = scmp.ne.s32.totalorder %s445, %s446
      %p460 = scmp.eq.s32.totalorder %s34, 1
      %p461 = por %p459, %p460
      %p463 = scmp.ne.s32.totalorder %s446, %s462
      %p464 = scmp.eq.s32.totalorder %s34, 0
      %p465 = por %p463, %p464
      %p466 = scmp.le.s32.totalorder 1, %s28
      %p467 = scmp.lt.s32.totalorder %s28, 3
      %p468 = pnand %p466, %p467
      %p469 = pneg %p468
      // Predicated region
      $region9: #{tpu_custom_call.1} parent=5 // pred_check
        _
      $region10: #{tpu_custom_call.1} parent=5 // pred_check_branch
        %471 = sbr.rel (%p468) target = $region12
      $region11: #{tpu_custom_call.1} parent=5 // pred_region
        %s472 = ssub.s32 %s28, 1
        // Predicated region
        $region13: #{tpu_custom_call.1} parent=11 // pred_check
          %p473 = pneg %p75
        $region14: #{tpu_custom_call.1} parent=11 // pred_check_branch
          %475 = sbr.rel (%p473) target = $region16
        $region15: #{tpu_custom_call.1} parent=11 // pred_region
          _
        $region16: #{tpu_custom_call.1} parent=11 // pred_fallthru
          _
        // Predicated region
        $region17: #{tpu_custom_call.1} parent=11 // pred_check
          %p476 = pneg %p96
        $region18: #{tpu_custom_call.1} parent=11 // pred_check_branch
          %478 = sbr.rel (%p476) target = $region20
        $region19: #{tpu_custom_call.1} parent=11 // pred_region
          _
        $region20: #{tpu_custom_call.1} parent=11 // pred_fallthru
          _
        // Predicated region
        $region21: #{tpu_custom_call.1} parent=11 // pred_check
          %p479 = pneg %p117
        $region22: #{tpu_custom_call.1} parent=11 // pred_check_branch
          %481 = sbr.rel (%p479) target = $region24
        $region23: #{tpu_custom_call.1} parent=11 // pred_region
          _
        $region24: #{tpu_custom_call.1} parent=11 // pred_fallthru
          _
        // Predicated region
        $region25: #{tpu_custom_call.1} parent=11 // pred_check
          %p482 = pneg %p138
        $region26: #{tpu_custom_call.1} parent=11 // pred_check_branch
          %484 = sbr.rel (%p482) target = $region28
        $region27: #{tpu_custom_call.1} parent=11 // pred_region
          _
        $region28: #{tpu_custom_call.1} parent=11 // pred_fallthru
          _
        // Predicated region
        $region29: #{tpu_custom_call.1} parent=11 // pred_check
          %p485 = pneg %p159
        $region30: #{tpu_custom_call.1} parent=11 // pred_check_branch
          %487 = sbr.rel (%p485) target = $region32
        $region31: #{tpu_custom_call.1} parent=11 // pred_region
          _
        $region32: #{tpu_custom_call.1} parent=11 // pred_fallthru
          _
        // Predicated region
        $region33: #{tpu_custom_call.1} parent=11 // pred_check
          %p488 = pneg %p180
        $region34: #{tpu_custom_call.1} parent=11 // pred_check_branch
          %490 = sbr.rel (%p488) target = $region36
        $region35: #{tpu_custom_call.1} parent=11 // pred_region
          _
        $region36: #{tpu_custom_call.1} parent=11 // pred_fallthru
          _
        // Predicated region
        $region37: #{tpu_custom_call.1} parent=11 // pred_check
          %p491 = pneg %p201
        $region38: #{tpu_custom_call.1} parent=11 // pred_check_branch
          %493 = sbr.rel (%p491) target = $region40
        $region39: #{tpu_custom_call.1} parent=11 // pred_region
          _
        $region40: #{tpu_custom_call.1} parent=11 // pred_fallthru
          _
        // Predicated region
        $region41: #{tpu_custom_call.1} parent=11 // pred_check
          %p494 = pneg %p222
        $region42: #{tpu_custom_call.1} parent=11 // pred_check_branch
          %496 = sbr.rel (%p494) target = $region44
        $region43: #{tpu_custom_call.1} parent=11 // pred_region
          _
        $region44: #{tpu_custom_call.1} parent=11 // pred_fallthru
          _
        // Predicated region
        $region45: #{tpu_custom_call.1} parent=11 // pred_check
          %p497 = pneg %p243
        $region46: #{tpu_custom_call.1} parent=11 // pred_check_branch
          %499 = sbr.rel (%p497) target = $region48
        $region47: #{tpu_custom_call.1} parent=11 // pred_region
          _
        $region48: #{tpu_custom_call.1} parent=11 // pred_fallthru
          _
        // Predicated region
        $region49: #{tpu_custom_call.1} parent=11 // pred_check
          %p500 = pneg %p264
        $region50: #{tpu_custom_call.1} parent=11 // pred_check_branch
          %502 = sbr.rel (%p500) target = $region52
        $region51: #{tpu_custom_call.1} parent=11 // pred_region
          _
        $region52: #{tpu_custom_call.1} parent=11 // pred_fallthru
          _
        // Predicated region
        $region53: #{tpu_custom_call.1} parent=11 // pred_check
          %p503 = pneg %p285
        $region54: #{tpu_custom_call.1} parent=11 // pred_check_branch
          %505 = sbr.rel (%p503) target = $region56
        $region55: #{tpu_custom_call.1} parent=11 // pred_region
          _
        $region56: #{tpu_custom_call.1} parent=11 // pred_fallthru
          _
        // Predicated region
        $region57: #{tpu_custom_call.1} parent=11 // pred_check
          %p506 = pneg %p306
        $region58: #{tpu_custom_call.1} parent=11 // pred_check_branch
          %508 = sbr.rel (%p506) target = $region60
        $region59: #{tpu_custom_call.1} parent=11 // pred_region
          _
        $region60: #{tpu_custom_call.1} parent=11 // pred_fallthru
          _
        // Predicated region
        $region61: #{tpu_custom_call.1} parent=11 // pred_check
          %p509 = pneg %p327
        $region62: #{tpu_custom_call.1} parent=11 // pred_check_branch
          %511 = sbr.rel (%p509) target = $region64
        $region63: #{tpu_custom_call.1} parent=11 // pred_region
          _
        $region64: #{tpu_custom_call.1} parent=11 // pred_fallthru
          _
        // Predicated region
        $region65: #{tpu_custom_call.1} parent=11 // pred_check
          %p512 = pneg %p348
        $region66: #{tpu_custom_call.1} parent=11 // pred_check_branch
          %514 = sbr.rel (%p512) target = $region68
        $region67: #{tpu_custom_call.1} parent=11 // pred_region
          _
        $region68: #{tpu_custom_call.1} parent=11 // pred_fallthru
          _
        // Predicated region
        $region69: #{tpu_custom_call.1} parent=11 // pred_check
          %p515 = pneg %p369
        $region70: #{tpu_custom_call.1} parent=11 // pred_check_branch
          %517 = sbr.rel (%p515) target = $region72
        $region71: #{tpu_custom_call.1} parent=11 // pred_region
          _
        $region72: #{tpu_custom_call.1} parent=11 // pred_fallthru
          _
        // Predicated region
        $region73: #{tpu_custom_call.1} parent=11 // pred_check
          %p518 = pneg %p390
        $region74: #{tpu_custom_call.1} parent=11 // pred_check_branch
          %520 = sbr.rel (%p518) target = $region76
        $region75: #{tpu_custom_call.1} parent=11 // pred_region
          _
        $region76: #{tpu_custom_call.1} parent=11 // pred_fallthru
          _
        // Predicated region
        $region77: #{tpu_custom_call.1} parent=11 // pred_check
          %p521 = pneg %p411
        $region78: #{tpu_custom_call.1} parent=11 // pred_check_branch
          %523 = sbr.rel (%p521) target = $region80
        $region79: #{tpu_custom_call.1} parent=11 // pred_region
          _
        $region80: #{tpu_custom_call.1} parent=11 // pred_fallthru
          _
        // Predicated region
        $region81: #{tpu_custom_call.1} parent=11 // pred_check
          %p524 = pneg %p432
        $region82: #{tpu_custom_call.1} parent=11 // pred_check_branch
          %526 = sbr.rel (%p524) target = $region84
        $region83: #{tpu_custom_call.1} parent=11 // pred_region
          _
        $region84: #{tpu_custom_call.1} parent=11 // pred_fallthru
          _
      $region12: #{tpu_custom_call.1} parent=5 // pred_fallthru
        _
      %p527 = scmp.lt.s32.totalorder %s28, 2
      // Predicated region
      $region85: #{tpu_custom_call.1} parent=5 // pred_check
        %p528 = pneg %p527
      $region86: #{tpu_custom_call.1} parent=5 // pred_check_branch
        %530 = sbr.rel (%p528) target = $region88
      $region87: #{tpu_custom_call.1} parent=5 // pred_region
        // Predicated region
        $region89: #{tpu_custom_call.1} parent=87 // pred_check
          %p531 = pneg %p48
        $region90: #{tpu_custom_call.1} parent=87 // pred_check_branch
          %533 = sbr.rel (%p531) target = $region92
        $region91: #{tpu_custom_call.1} parent=87 // pred_region
          %p534 = scmp.lt.s32.totalorder %s28, 1
          %s535 = scalar_select %p534, %s28, 1
          %s536 = smul.addr %s535, 8
          %s537 = scalar_lea.vmem %s0, %s536
        $region92: #{tpu_custom_call.1} parent=87 // pred_fallthru
          _
      $region88: #{tpu_custom_call.1} parent=5 // pred_fallthru
        _
      %p538 = scmp.le.s32.totalorder 1, %s28
      %p539 = scmp.lt.s32.totalorder %s28, 3
      %p540 = pnand %p538, %p539
      %p541 = pneg %p540
      // Predicated region
      $region93: #{tpu_custom_call.1} parent=5 // pred_check
        _
      $region94: #{tpu_custom_call.1} parent=5 // pred_check_branch
        %543 = sbr.rel (%p540) target = $region96
      $region95: #{tpu_custom_call.1} parent=5 // pred_region
        %s544 = ssub.s32 %s28, 1
        %p545 = scmp.lt.s32.totalorder %s33, 1
        %s546 = scalar_select %p545, %s33, 1
        %s547 = smul.addr %s546, 8
        %s548 = scalar_lea.vmem %s0, %s547
        %p549 = pneg %p54
        %p550 = pneg %p51
        %p551 = pneg %p75
        %p552 = pneg %p72
        %p553 = pneg %p96
        %p554 = pneg %p93
        %p555 = pneg %p117
        %p556 = pneg %p114
        %p557 = pneg %p138
        %p558 = pneg %p135
        %p559 = pneg %p159
        %p560 = pneg %p156
        %p561 = pneg %p180
        %p562 = pneg %p177
        %p563 = pneg %p201
        %p564 = pneg %p198
        %p565 = pneg %p222
        %p566 = pneg %p219
        %p567 = pneg %p243
        %p568 = pneg %p240
        %p569 = pneg %p264
        %p570 = pneg %p261
        %p571 = pneg %p285
        %p572 = pneg %p282
        %p573 = pneg %p306
        %p574 = pneg %p303
        %p575 = pneg %p327
        %p576 = pneg %p324
        %p577 = pneg %p348
        %p578 = pneg %p345
        %p579 = pneg %p369
        %p580 = pneg %p366
        %p581 = pneg %p390
        %p582 = pneg %p387
        %p583 = pneg %p411
        %p584 = pneg %p408
        %p585 = pneg %p432
        %p586 = pneg %p429
        %p587 = pneg %p458
        %p588 = pneg %p455
        %s589 = sand.u32 %s445, 1
        %s590 = scalar_lea.sflag [#allocation3], %s589
        %s591 = sand.u32 %s445, 1
        %s592 = smul.addr %s591, 8
        %s593 = scalar_lea.vmem [#allocation2], %s592
        %p594 = scmp.lt.s32.totalorder %s33, 1
        %s595 = scalar_select %p594, %s33, 1
        %s596 = smul.addr %s595, 8
        %s597 = scalar_lea.vmem %s0, %s596
        %v598 = vld [vmem:[%s597] sm:$0xff]
        %v600 = vrot.slane %v598, 7
        %vm602 = vcmask 1040384
        %v603 = vsel %vm602, 0.0, %v600
        %v604 = vrot.slane %v598, 1
        %vm606 = vcmask 1046528
        %v607 = vsel %vm606, %v604, 0.0
        %608 = vrot.lane.b32.xlu0 %v598, 6
        %v609 = vpop.permute.xlu0 %608
        %612 = vrot.lane.b32.xlu0 %v607, 12
        %v613 = vpop.permute.xlu0 %612
        %vm615 = vcmask 48128
        %v616 = vsel %vm615, %v603, %v609
        %vm617 = vcmask 97280
        %v618 = vsel %vm617, %v616, %v613
        %v619 = vld [vmem:[%s1] sm:$0xff]
        %v620 = vld [vmem:[%s1 + $0x8] sm:$0xff]
        %v621 = vld [vmem:[%s1 + $0x10] sm:$0x3]
        %v622 = vld [vmem:[%s2] sm:$0x1]
        %v624 = vperm.slane %v622, 0
        %vm626 = vcmask 146432
        %v628 = vsel %vm626, %v618, 0
        %vm630 = vcmask 1041408
        %v632 = vsel %vm630, %v621, 0
        %634 = vmatpush.msra.mxu0 0.0
        %635 = vmatpush.msra.mxu0 0.0
        %636 = vmatpush.msra.mxu0 0.0
        %637 = vmatpush.msra.mxu0 0.0
        %638 = vmatpush.msra.mxu0 0.0
        %639 = vmatpush.msra.mxu0 0.0
        %640 = vmatpush.msra.mxu0 0.0
        %641 = vmatpush.msra.mxu0 0.0
        %642 = vmatpush.msra.mxu0 0.0
        %643 = vmatpush.msra.mxu0 0.0
        %644 = vmatpush.msra.mxu0 0.0
        %645 = vmatpush.msra.mxu0 0.0
        %646 = vmatpush.msra.mxu0 0.0
        %647 = vmatpush.msra.mxu0 %v632
        %648 = vmatpush.msra.mxu0 %v620
        %649 = vmatpush.msra.mxu0 %v619
        %650 = vmatmul.f32.gmra.mxu0 %v628
        %v651 = vpop.f32.mrf.mxu0
        %v652 = vadd.f32 %v624, %v651
        %653 = vdwg.mxu0
        %v655 = vrot.slane %v652, 7
        %v657 = vsel %vm602, 0.0, %v655
        %v658 = vrot.slane %v652, 1
        %v660 = vsel %vm606, %v658, 0.0
        %661 = vrot.lane.b32.xlu0 %v652, 8
        %v662 = vpop.permute.xlu0 %661
        %665 = vrot.lane.b32.xlu0 %v660, 16
        %v666 = vpop.permute.xlu0 %665
        %vm668 = vcmask 64512
        %v669 = vsel %vm668, %v657, %v662
        %vm670 = vcmask 130048
        %v671 = vsel %vm670, %v669, %v666
        %v672 = vld [vmem:[%s3] sm:$0xff]
        %v673 = vld [vmem:[%s3 + $0x8] sm:$0xff]
        %v674 = vld [vmem:[%s3 + $0x10] sm:$0xff]
        %v675 = vld [vmem:[%s4] sm:$0x1]
        %v677 = vperm.slane %v675, 0
        %vm679 = vcmask 195584
        %v681 = vsel %vm679, %v671, 0
        %683 = vmatpush.msra.mxu0 0.0
        %684 = vmatpush.msra.mxu0 0.0
        %685 = vmatpush.msra.mxu0 0.0
        %686 = vmatpush.msra.mxu0 0.0
        %687 = vmatpush.msra.mxu0 0.0
        %688 = vmatpush.msra.mxu0 0.0
        %689 = vmatpush.msra.mxu0 0.0
        %690 = vmatpush.msra.mxu0 0.0
        %691 = vmatpush.msra.mxu0 0.0
        %692 = vmatpush.msra.mxu0 0.0
        %693 = vmatpush.msra.mxu0 0.0
        %694 = vmatpush.msra.mxu0 0.0
        %695 = vmatpush.msra.mxu0 0.0
        %696 = vmatpush.msra.mxu0 %v674
        %697 = vmatpush.msra.mxu0 %v673
        %698 = vmatpush.msra.mxu0 %v672
        %699 = vmatmul.f32.gmra.mxu0 %v681
        %v700 = vpop.f32.mrf.mxu0
        %v701 = vadd.f32 %v677, %v700
        %702 = vdwg.mxu0
        %v703 = vmax.f32 %v701, 0.0
        %v705 = vrot.slane %v703, 7
        %v707 = vsel %vm602, 0.0, %v705
        %v708 = vrot.slane %v703, 1
        %v710 = vsel %vm606, %v708, 0.0
        %711 = vrot.lane.b32.xlu0 %v703, 8
        %v712 = vpop.permute.xlu0 %711
        %715 = vrot.lane.b32.xlu0 %v710, 16
        %v716 = vpop.permute.xlu0 %715
        %v718 = vsel %vm668, %v707, %v712
        %v719 = vsel %vm670, %v718, %v716
        %v720 = vld [vmem:[%s5] sm:$0xff]
        %v721 = vld [vmem:[%s5 + $0x8] sm:$0xff]
        %v722 = vld [vmem:[%s5 + $0x10] sm:$0xff]
        %v723 = vld [vmem:[%s6] sm:$0x1]
        %v725 = vperm.slane %v723, 0
        %v728 = vsel %vm679, %v719, 0
        %730 = vmatpush.msra.mxu0 0.0
        %731 = vmatpush.msra.mxu0 0.0
        %732 = vmatpush.msra.mxu0 0.0
        %733 = vmatpush.msra.mxu0 0.0
        %734 = vmatpush.msra.mxu0 0.0
        %735 = vmatpush.msra.mxu0 0.0
        %736 = vmatpush.msra.mxu0 0.0
        %737 = vmatpush.msra.mxu0 0.0
        %738 = vmatpush.msra.mxu0 0.0
        %739 = vmatpush.msra.mxu0 0.0
        %740 = vmatpush.msra.mxu0 0.0
        %741 = vmatpush.msra.mxu0 0.0
        %742 = vmatpush.msra.mxu0 0.0
        %743 = vmatpush.msra.mxu0 %v722
        %744 = vmatpush.msra.mxu0 %v721
        %745 = vmatpush.msra.mxu0 %v720
        %746 = vmatmul.f32.gmra.mxu0 %v728
        %v747 = vpop.f32.mrf.mxu0
        %v748 = vadd.f32 %v725, %v747
        %749 = vdwg.mxu0
        %v750 = vadd.f32 %v748, %v652
        %v752 = vrot.slane %v750, 7
        %v754 = vsel %vm602, 0.0, %v752
        %v755 = vrot.slane %v750, 1
        %v757 = vsel %vm606, %v755, 0.0
        %758 = vrot.lane.b32.xlu0 %v750, 8
        %v759 = vpop.permute.xlu0 %758
        %762 = vrot.lane.b32.xlu0 %v757, 16
        %v763 = vpop.permute.xlu0 %762
        %v765 = vsel %vm668, %v754, %v759
        %v766 = vsel %vm670, %v765, %v763
        %v767 = vld [vmem:[%s7] sm:$0xff]
        %v768 = vld [vmem:[%s7 + $0x8] sm:$0xff]
        %v769 = vld [vmem:[%s7 + $0x10] sm:$0xff]
        %v770 = vld [vmem:[%s8] sm:$0x1]
        %v772 = vperm.slane %v770, 0
        %v775 = vsel %vm679, %v766, 0
        %777 = vmatpush.msra.mxu0 0.0
        %778 = vmatpush.msra.mxu0 0.0
        %779 = vmatpush.msra.mxu0 0.0
        %780 = vmatpush.msra.mxu0 0.0
        %781 = vmatpush.msra.mxu0 0.0
        %782 = vmatpush.msra.mxu0 0.0
        %783 = vmatpush.msra.mxu0 0.0
        %784 = vmatpush.msra.mxu0 0.0
        %785 = vmatpush.msra.mxu0 0.0
        %786 = vmatpush.msra.mxu0 0.0
        %787 = vmatpush.msra.mxu0 0.0
        %788 = vmatpush.msra.mxu0 0.0
        %789 = vmatpush.msra.mxu0 0.0
        %790 = vmatpush.msra.mxu0 %v769
        %791 = vmatpush.msra.mxu0 %v768
        %792 = vmatpush.msra.mxu0 %v767
        %793 = vmatmul.f32.gmra.mxu0 %v775
        %v794 = vpop.f32.mrf.mxu0
        %v795 = vadd.f32 %v772, %v794
        %796 = vdwg.mxu0
        %v797 = vmax.f32 %v795, 0.0
        %v799 = vrot.slane %v797, 7
        %v801 = vsel %vm602, 0.0, %v799
        %v802 = vrot.slane %v797, 1
        %v804 = vsel %vm606, %v802, 0.0
        %805 = vrot.lane.b32.xlu0 %v797, 8
        %v806 = vpop.permute.xlu0 %805
        %809 = vrot.lane.b32.xlu0 %v804, 16
        %v810 = vpop.permute.xlu0 %809
        %v812 = vsel %vm668, %v801, %v806
        %v813 = vsel %vm670, %v812, %v810
        %v814 = vld [vmem:[%s9] sm:$0xff]
        %v815 = vld [vmem:[%s9 + $0x8] sm:$0xff]
        %v816 = vld [vmem:[%s9 + $0x10] sm:$0xff]
        %v817 = vld [vmem:[%s10] sm:$0x1]
        %v819 = vperm.slane %v817, 0
        %v822 = vsel %vm679, %v813, 0
        %824 = vmatpush.msra.mxu0 0.0
        %825 = vmatpush.msra.mxu0 0.0
        %826 = vmatpush.msra.mxu0 0.0
        %827 = vmatpush.msra.mxu0 0.0
        %828 = vmatpush.msra.mxu0 0.0
        %829 = vmatpush.msra.mxu0 0.0
        %830 = vmatpush.msra.mxu0 0.0
        %831 = vmatpush.msra.mxu0 0.0
        %832 = vmatpush.msra.mxu0 0.0
        %833 = vmatpush.msra.mxu0 0.0
        %834 = vmatpush.msra.mxu0 0.0
        %835 = vmatpush.msra.mxu0 0.0
        %836 = vmatpush.msra.mxu0 0.0
        %837 = vmatpush.msra.mxu0 %v816
        %838 = vmatpush.msra.mxu0 %v815
        %839 = vmatpush.msra.mxu0 %v814
        %840 = vmatmul.f32.gmra.mxu0 %v822
        %v841 = vpop.f32.mrf.mxu0
        %v842 = vadd.f32 %v819, %v841
        %843 = vdwg.mxu0
        %v844 = vadd.f32 %v842, %v750
        %v846 = vrot.slane %v844, 7
        %v848 = vsel %vm602, 0.0, %v846
        %v849 = vrot.slane %v844, 1
        %v851 = vsel %vm606, %v849, 0.0
        %852 = vrot.lane.b32.xlu0 %v844, 8
        %v853 = vpop.permute.xlu0 %852
        %v855 = vsel %vm668, %v848, %v853
        %857 = vrot.lane.b32.xlu0 %v851, 8
        %v858 = vpop.permute.xlu0 %857
        %v860 = vsel %vm668, %v844, %v858
        %v861 = vld [vmem:[%s11] sm:$0xff]
        %v862 = vld [vmem:[%s11 + $0x8] sm:$0xff]
        %v863 = vld [vmem:[%s13] sm:$0x1]
        %v865 = vperm.slane %v863, 0
        %v868 = vsel %vm670, %v855, 0
        %870 = vmatpush.msra.mxu0 0.0
        %871 = vmatpush.msra.mxu0 0.0
        %872 = vmatpush.msra.mxu0 0.0
        %873 = vmatpush.msra.mxu0 0.0
        %874 = vmatpush.msra.mxu0 0.0
        %875 = vmatpush.msra.mxu0 0.0
        %876 = vmatpush.msra.mxu0 0.0
        %877 = vmatpush.msra.mxu0 0.0
        %878 = vmatpush.msra.mxu0 0.0
        %879 = vmatpush.msra.mxu0 0.0
        %880 = vmatpush.msra.mxu0 0.0
        %881 = vmatpush.msra.mxu0 0.0
        %882 = vmatpush.msra.mxu0 0.0
        %883 = vmatpush.msra.mxu0 0.0
        %884 = vmatpush.msra.mxu0 %v862
        %885 = vmatpush.msra.mxu0 %v861
        %886 = vmatmul.f32.gmra.mxu0 %v868
        %v887 = vpop.f32.mrf.mxu0
        %v888 = vadd.f32 %v865, %v887
        %889 = vdwg.mxu0
        %v890 = vld [vmem:[%s12] sm:$0xff]
        %v891 = vld [vmem:[%s12 + $0x8] sm:$0xff]
        %v893 = vsel %vm670, %v860, 0
        %895 = vmatpush.msra.mxu0 0.0
        %896 = vmatpush.msra.mxu0 0.0
        %897 = vmatpush.msra.mxu0 0.0
        %898 = vmatpush.msra.mxu0 0.0
        %899 = vmatpush.msra.mxu0 0.0
        %900 = vmatpush.msra.mxu0 0.0
        %901 = vmatpush.msra.mxu0 0.0
        %902 = vmatpush.msra.mxu0 0.0
        %903 = vmatpush.msra.mxu0 0.0
        %904 = vmatpush.msra.mxu0 0.0
        %905 = vmatpush.msra.mxu0 0.0
        %906 = vmatpush.msra.mxu0 0.0
        %907 = vmatpush.msra.mxu0 0.0
        %908 = vmatpush.msra.mxu0 0.0
        %909 = vmatpush.msra.mxu0 %v891
        %910 = vmatpush.msra.mxu0 %v890
        %911 = vmatmul.f32.gmra.mxu0 %v893
        %v912 = vpop.f32.mrf.mxu0
        %v913 = vadd.f32 %v865, %v912
        %914 = vdwg.mxu0
        %vm915 = vcmp.gt.f32.partialorder %v888, 0.0
        %v916 = vmul.f32 %v888, 0.2
        %v917 = vsel %vm915, %v888, %v916
        %vm918 = vcmp.gt.f32.partialorder %v913, 0.0
        %v919 = vmul.f32 %v913, 0.2
        %v920 = vsel %vm918, %v913, %v919
        %v922 = vrot.slane %v920, 7
        %v924 = vsel %vm602, 0.0, %v922
        %v926 = vrot.slane %v917, 1
        %v928 = vsel %vm606, %v926, 0.0
        %929 = vrot.lane.b32.xlu0 %v917, 8
        %v930 = vpop.permute.xlu0 %929
        %931 = vrot.lane.b32.xlu0 %v920, 8
        %v932 = vpop.permute.xlu0 %931
        %v935 = vsel %vm668, %v924, %v930
        %v936 = vsel %vm668, %v917, %v932
        %938 = vrot.lane.b32.xlu0 %v928, 8
        %v939 = vpop.permute.xlu0 %938
        %v941 = vsel %vm668, %v920, %v939
        %v942 = vld [vmem:[%s14] sm:$0xff]
        %v943 = vld [vmem:[%s14 + $0x8] sm:$0xff]
        %v944 = vld [vmem:[%s16] sm:$0x1]
        %v946 = vperm.slane %v944, 0
        %v949 = vsel %vm670, %v935, 0
        %v952 = vsel %vm670, %v936, 0
        %954 = vmatpush.msra.mxu0 0.0
        %955 = vmatpush.msra.mxu0 0.0
        %956 = vmatpush.msra.mxu0 0.0
        %957 = vmatpush.msra.mxu0 0.0
        %958 = vmatpush.msra.mxu0 0.0
        %959 = vmatpush.msra.mxu0 0.0
        %960 = vmatpush.msra.mxu0 0.0
        %961 = vmatpush.msra.mxu0 0.0
        %962 = vmatpush.msra.mxu0 0.0
        %963 = vmatpush.msra.mxu0 0.0
        %964 = vmatpush.msra.mxu0 0.0
        %965 = vmatpush.msra.mxu0 0.0
        %966 = vmatpush.msra.mxu0 0.0
        %967 = vmatpush.msra.mxu0 0.0
        %968 = vmatpush.msra.mxu0 %v943
        %969 = vmatpush.msra.mxu0 %v942
        %970 = vmatmul.f32.gmra.mxu0 %v949
        %v971 = vpop.f32.mrf.mxu0
        %v972 = vadd.f32 %v946, %v971
        %973 = vmatmul.f32.gmra.mxu0 %v952
        %v974 = vpop.f32.mrf.mxu0
        %v975 = vadd.f32 %v946, %v974
        %976 = vdwg.mxu0
        %v977 = vld [vmem:[%s15] sm:$0xff]
        %v978 = vld [vmem:[%s15 + $0x8] sm:$0xff]
        %v980 = vsel %vm670, %v941, 0
        %982 = vmatpush.msra.mxu0 0.0
        %983 = vmatpush.msra.mxu0 0.0
        %984 = vmatpush.msra.mxu0 0.0
        %985 = vmatpush.msra.mxu0 0.0
        %986 = vmatpush.msra.mxu0 0.0
        %987 = vmatpush.msra.mxu0 0.0
        %988 = vmatpush.msra.mxu0 0.0
        %989 = vmatpush.msra.mxu0 0.0
        %990 = vmatpush.msra.mxu0 0.0
        %991 = vmatpush.msra.mxu0 0.0
        %992 = vmatpush.msra.mxu0 0.0
        %993 = vmatpush.msra.mxu0 0.0
        %994 = vmatpush.msra.mxu0 0.0
        %995 = vmatpush.msra.mxu0 0.0
        %996 = vmatpush.msra.mxu0 %v978
        %997 = vmatpush.msra.mxu0 %v977
        %998 = vmatmul.f32.gmra.mxu0 %v952
        %v999 = vpop.f32.mrf.mxu0
        %v1000 = vadd.f32 %v946, %v999
        %1001 = vmatmul.f32.gmra.mxu0 %v980
        %v1002 = vpop.f32.mrf.mxu0
        %v1003 = vadd.f32 %v946, %v1002
        %1004 = vdwg.mxu0
        %vm1005 = vcmp.gt.f32.partialorder %v972, 0.0
        %vm1006 = vcmp.gt.f32.partialorder %v975, 0.0
        %v1007 = vmul.f32 %v972, 0.2
        %v1008 = vmul.f32 %v975, 0.2
        %v1009 = vsel %vm1005, %v972, %v1007
        %v1010 = vsel %vm1006, %v975, %v1008
        %vm1011 = vcmp.gt.f32.partialorder %v1000, 0.0
        %vm1012 = vcmp.gt.f32.partialorder %v1003, 0.0
        %v1013 = vmul.f32 %v1000, 0.2
        %v1014 = vmul.f32 %v1003, 0.2
        %v1015 = vsel %vm1011, %v1000, %v1013
        %v1016 = vsel %vm1012, %v1003, %v1014
        %v1018 = vrot.slane %v1016, 7
        %v1020 = vsel %vm602, 0.0, %v1018
        %v1022 = vrot.slane %v1009, 1
        %v1024 = vsel %vm606, %v1022, 0.0
        %1027 = vrot.lane.b32.xlu0 %v1009, 4
        %v1028 = vpop.permute.xlu0 %1027
        %1029 = vrot.lane.b32.xlu0 %v1015, 4
        %v1030 = vpop.permute.xlu0 %1029
        %1031 = vrot.lane.b32.xlu0 %v1010, 4
        %v1032 = vpop.permute.xlu0 %1031
        %1033 = vrot.lane.b32.xlu0 %v1016, 4
        %v1034 = vpop.permute.xlu0 %1033
        %1040 = vrot.lane.b32.xlu0 %v1015, 8
        %v1041 = vpop.permute.xlu0 %1040
        %1042 = vrot.lane.b32.xlu0 %v1010, 8
        %v1043 = vpop.permute.xlu0 %1042
        %1044 = vrot.lane.b32.xlu0 %v1016, 8
        %v1045 = vpop.permute.xlu0 %1044
        %1046 = vrot.lane.b32.xlu0 %v1024, 8
        %v1047 = vpop.permute.xlu0 %1046
        %vm1052 = vcmask 31744
        %v1053 = vsel %vm1052, %v1020, %v1028
        %v1054 = vsel %vm1052, %v1009, %v1030
        %v1055 = vsel %vm1052, %v1015, %v1032
        %v1056 = vsel %vm1052, %v1010, %v1034
        %v1057 = vsel %vm668, %v1053, %v1041
        %v1058 = vsel %vm668, %v1054, %v1043
        %v1059 = vsel %vm668, %v1055, %v1045
        %v1060 = vsel %vm668, %v1056, %v1047
        %v1061 = vld [vmem:[%s17] sm:$0xff]
        %v1062 = vld [vmem:[%s17 + $0x8] sm:$0xf]
        %v1063 = vld [vmem:[%s18] sm:$0x1]
        %v1065 = vperm.slane %v1063, 0
        %v1068 = vsel %vm617, %v1057, 0
        %v1071 = vsel %vm617, %v1058, 0
        %v1074 = vsel %vm617, %v1059, 0
        %v1077 = vsel %vm617, %v1060, 0
        %vm1079 = vcmask 1043456
        %v1081 = vsel %vm1079, %v1062, 0
        %1083 = vmatpush.msra.mxu0 0.0
        %1084 = vmatpush.msra.mxu0 0.0
        %1085 = vmatpush.msra.mxu0 0.0
        %1086 = vmatpush.msra.mxu0 0.0
        %1087 = vmatpush.msra.mxu0 0.0
        %1088 = vmatpush.msra.mxu0 0.0
        %1089 = vmatpush.msra.mxu0 0.0
        %1090 = vmatpush.msra.mxu0 0.0
        %1091 = vmatpush.msra.mxu0 0.0
        %1092 = vmatpush.msra.mxu0 0.0
        %1093 = vmatpush.msra.mxu0 0.0
        %1094 = vmatpush.msra.mxu0 0.0
        %1095 = vmatpush.msra.mxu0 0.0
        %1096 = vmatpush.msra.mxu0 0.0
        %1097 = vmatpush.msra.mxu0 %v1081
        %1098 = vmatpush.msra.mxu0 %v1061
        %1099 = vmatmul.f32.gmra.mxu0 %v1068
        %v1100 = vpop.f32.mrf.mxu0
        %v1101 = vadd.f32 %v1065, %v1100
        %1102 = vmatmul.f32.gmra.mxu0 %v1071
        %v1103 = vpop.f32.mrf.mxu0
        %v1104 = vadd.f32 %v1065, %v1103
        %1105 = vmatmul.f32.gmra.mxu0 %v1074
        %v1106 = vpop.f32.mrf.mxu0
        %v1107 = vadd.f32 %v1065, %v1106
        %1108 = vmatmul.f32.gmra.mxu0 %v1077
        %v1109 = vpop.f32.mrf.mxu0
        %v1110 = vadd.f32 %v1065, %v1109
        %1111 = vdwg.mxu0
        %1112 = vst.msk [vmem:[%s593] sm:$0xff] %vm1052, %v1101
        %1114 = vrot.lane.b32.xlu0 %v1104, 4
        %v1115 = vpop.permute.xlu0 %1114
        %vm1117 = vcmask 64544
        %1118 = vst.msk [vmem:[%s593] sm:$0xff] %vm1117, %v1115
        %1120 = vrot.lane.b32.xlu0 %v1107, 8
        %v1121 = vpop.permute.xlu0 %1120
        %vm1123 = vcmask 97344
        %1124 = vst.msk [vmem:[%s593] sm:$0xff] %vm1123, %v1121
        %1126 = vrot.lane.b32.xlu0 %v1110, 12
        %v1127 = vpop.permute.xlu0 %1126
        %vm1129 = vcmask 130144
        %1130 = vst.msk [vmem:[%s593] sm:$0xff] %vm1129, %v1127
        %s1131 = sand.u32 %s445, 1
        %s1132 = scalar_lea.sflag [#allocation3], %s1131
        %s1133 = sand.u32 %s445, 1
        %s1134 = smul.addr %s1133, 8
        %s1135 = scalar_lea.vmem [#allocation2], %s1134
        // Predicated region
        $region97: #{tpu_custom_call.1} parent=95 // pred_check
          %p1136 = pneg %p455
        $region98: #{tpu_custom_call.1} parent=95 // pred_check_branch
          %1138 = sbr.rel (%p1136) target = $region100
        $region99: #{tpu_custom_call.1} parent=95 // pred_region
          %1140 = vsyncadd %s1132, 0
          %s1141 = smul.addr %s33, 8
          %s1142 = scalar_lea.hbm %s19, %s1141
          %s1144 = sshll.u32 %s1135, 4
          %s1145 = int_to_ptr.vmem [resolvable:$true] %s1144
          %s1146 = sshll.u32 %s1142, 4
          %s1147 = int_to_ptr.hbm [resolvable:$true] %s1146
          %1149 = dma.vmem_to_hbm [thread:$0]  %s1145, 128, %s1147, %s1132
        $region100: #{tpu_custom_call.1} parent=95 // pred_fallthru
          _
      $region96: #{tpu_custom_call.1} parent=5 // pred_fallthru
        _
      %p1150 = scmp.le.s32.totalorder 2, %s28
      // Predicated region
      $region101: #{tpu_custom_call.1} parent=5 // pred_check
        %p1151 = pneg %p1150
      $region102: #{tpu_custom_call.1} parent=5 // pred_check_branch
        %1153 = sbr.rel (%p1151) target = $region104
      $region103: #{tpu_custom_call.1} parent=5 // pred_region
        %s1154 = ssub.s32 %s28, 2
        // Predicated region
        $region105: #{tpu_custom_call.1} parent=103 // pred_check
          %p1155 = pneg %p461
        $region106: #{tpu_custom_call.1} parent=103 // pred_check_branch
          %1157 = sbr.rel (%p1155) target = $region108
        $region107: #{tpu_custom_call.1} parent=103 // pred_region
          %s1158 = sand.u32 %s446, 1
          %s1159 = scalar_lea.sflag [#allocation3], %s1158
          %s1160 = sand.u32 %s446, 1
          %s1161 = smul.addr %s1160, 8
          %s1162 = scalar_lea.vmem [#allocation2], %s1161
          %1164 = dma.done %s1159, 128
        $region108: #{tpu_custom_call.1} parent=103 // pred_fallthru
          _
      $region104: #{tpu_custom_call.1} parent=5 // pred_fallthru
        _
    $region6: #{tpu_custom_call.1} parent=1 // loop_footer
      %s32 = sadd.s32 1, %s28
    $region7: #{tpu_custom_call.1} parent=1 // loop_footer_branch
      %27 = sbr.rel target = $region3
    $region8: #{tpu_custom_call.1} parent=1 // loop_exit
      _
    %1165 = vsyncpa [#allocation3], 1
    %s1166 = scalar_lea.sflag [#allocation3], 1
    %1167 = vsyncpa %s1166, 1

</llo_original>
